<compile_context>
chip_gen: v7x
topology: tpu7x:2x2x1
jax: 0.10.0
libtpu: 0.0.40
codegen_flags: <defaults>
</compile_context>

<pallas_src>
import numpy as np
import jax
import jax.numpy as jnp
from jax.experimental import pallas as pl
from jax.experimental.pallas import tpu as pltpu


def _cdiv(a, b):
    return (a + b - 1) // b


def _round_up(a, b):
    return _cdiv(a, b) * b


def _num_tensorcores():
    """Best-effort TensorCore count of the local device (1 on v5e/v6e)."""
    try:
        n = getattr(jax.devices()[0], "num_cores", 1)
        return max(1, int(n))
    except Exception:
        return 1


def _rfft2_matrices_t(H, W):
    """Transposed dense flattened rfft2 matrices, shape (H*Wf, H*W).

    KrT[(m*Wf+k), (h*W+w)] = cos(-2*pi*(m*h/H + k*w/W))
    KiT[(m*Wf+k), (h*W+w)] = sin(-2*pi*(m*h/H + k*w/W))
    so that re = KrT @ x_flat_T, im = KiT @ x_flat_T matches
    torch.fft.rfft2(x, norm='backward').
    """
    Wf = W // 2 + 1
    m = np.arange(H, dtype=np.float64)
    k = np.arange(Wf, dtype=np.float64)
    h = np.arange(H, dtype=np.float64)
    w = np.arange(W, dtype=np.float64)
    ang = -2.0 * np.pi * (
        np.einsum("m,h->mh", m, h)[:, None, :, None] / H
        + np.einsum("k,w->kw", k, w)[None, :, None, :] / W
    )  # (H, Wf, H, W)
    ang = ang.reshape(H * Wf, H * W)
    krt = jnp.asarray(np.cos(ang), jnp.float32)
    kit = jnp.asarray(np.sin(ang), jnp.float32)
    return krt, kit


def _pha_kernel(x_ref, y_ref, krt_ref, kit_ref, out_ref, acc_ref):
    j = pl.program_id(1)

    @pl.when(j == 0)
    def _():
        acc_ref[...] = jnp.zeros_like(acc_ref)

    krt = krt_ref[...]                      # (HWf, HW)
    kit = kit_ref[...]
    xb = x_ref[...]                         # (HW, nb) lane-dense
    yb = y_ref[...]

    # Four MXU dots (no concat copy); outputs (HWf, nb): sublanes = HWf.
    re_x = jnp.dot(krt, xb, preferred_element_type=jnp.float32)
    im_x = jnp.dot(kit, xb, preferred_element_type=jnp.float32)
    re_y = jnp.dot(krt, yb, preferred_element_type=jnp.float32)
    im_y = jnp.dot(kit, yb, preferred_element_type=jnp.float32)

    # torch.angle == atan2(imag, real); atan2(0,0)=0 matches zero padding.
    ph_x = jnp.arctan2(im_x, re_x)
    ph_y = jnp.arctan2(im_y, re_y)

    # Elementwise (VPU-only) accumulation; full reduce deferred to epilogue.
    acc_ref[...] += jnp.abs(ph_x - ph_y)

    @pl.when(j == pl.num_programs(1) - 1)
    def _():
        total = jnp.sum(acc_ref[...])
        out_ref[...] = jnp.broadcast_to(total, out_ref.shape)


def pha_loss(x, y, *, nb_max=512):
    """Equivalent of PhaLoss().forward(x, y) for NCHW float inputs."""
    B, C, H, W = x.shape
    assert y.shape == x.shape
    N = B * C
    HW = H * W
    Wf = W // 2 + 1
    HWf = H * Wf

    # Batch on lanes: (HW, N).
    xf = x.reshape(N, HW).astype(jnp.float32).T
    yf = y.reshape(N, HW).astype(jnp.float32).T

    # Images per grid step: multiple of 128 so lane dim is fully dense.
    nb = int(min(_round_up(nb_max, 128), _round_up(N, 128)))
    steps = _cdiv(N, nb)

    # Only pay for the parallel slice where a 2nd TensorCore exists (v7x).
    num_tc = _num_tensorcores()
    p = num_tc if (num_tc > 1 and steps >= num_tc) else 1
    s = _cdiv(steps, p)

    n_pad = p * s * nb
    if n_pad != N:
        pad = n_pad - N
        xf = jnp.pad(xf, ((0, 0), (0, pad)))
        yf = jnp.pad(yf, ((0, 0), (0, pad)))

    krt, kit = _rfft2_matrices_t(H, W)      # (HWf, HW) each, VMEM resident
    denom = float(N * H * Wf)               # L1Loss 'mean' over (N, H, Wf)

    img_spec = pl.BlockSpec((HW, nb), lambda pi, j: (0, pi * s + j))
    dft_spec = pl.BlockSpec((HWf, HW), lambda pi, j: (0, 0))

    # Explicit scoped-VMEM budget (v5e default is only 16 MiB).
    vmem_bytes = (
        2 * 2 * HW * nb * 4                 # x, y blocks, double-buffered
        + 2 * 2 * HWf * HW * 4              # KrT, KiT (double-buffered)
        + HWf * nb * 4                      # acc scratch
        + 8 * HWf * nb * 4                  # re/im/ph temporaries headroom
        + (1 << 22)                         # 4 MiB slack
    )
    vmem_bytes = int(min(vmem_bytes, 64 * 1024 * 1024))

    cost = pl.CostEstimate(
        flops=int(8 * n_pad * HW * HWf),        # 4 dots of (HWf,HW)@(HW,nb)
        transcendentals=int(2 * n_pad * HWf),   # atan2 per element, x and y
        bytes_accessed=int((2 * n_pad * HW + 2 * HWf * HW + p * 8 * 128) * 4),
    )

    out = pl.pallas_call(
        _pha_kernel,
        out_shape=jax.ShapeDtypeStruct((p, 8, 128), jnp.float32),
        grid_spec=pltpu.PrefetchScalarGridSpec(
            num_scalar_prefetch=0,
            grid=(p, s),
            in_specs=[img_spec, img_spec, dft_spec, dft_spec],
            out_specs=pl.BlockSpec((1, 8, 128), lambda pi, j: (pi, 0, 0)),
            scratch_shapes=[pltpu.VMEM((HWf, nb), jnp.float32)],
        ),
        compiler_params=pltpu.CompilerParams(
            dimension_semantics=("parallel", "arbitrary"),
            vmem_limit_bytes=vmem_bytes,
        ),
        cost_estimate=cost,
    )(xf, yf, krt, kit)

    return jnp.sum(out[:, 0, 0]) / denom


if __name__ == "__main__":
    key = jax.random.PRNGKey(0)
    kx, ky = jax.random.split(key)
    B, C, H, W = 2, 4, 16, 16
    x = jax.random.normal(kx, (B, C, H, W), dtype=jnp.float32)
    y = jax.random.normal(ky, (B, C, H, W), dtype=jnp.float32)

    loss = pha_loss(x, y)
    jax.block_until_ready(loss)
    print("KERNEL_OK")
</pallas_src>

<mosaic_0001>
module attributes {stable_mosaic.version = 11 : i64} {
  func.func @_pha_kernel(%arg0: i32, %arg1: i32, %arg2: memref<256x128xf32, #tpu.memory_space<vmem>>, %arg3: memref<256x128xf32, #tpu.memory_space<vmem>>, %arg4: memref<144x256xf32, #tpu.memory_space<vmem>>, %arg5: memref<144x256xf32, #tpu.memory_space<vmem>>, %arg6: memref<1x8x128xf32, #tpu.memory_space<vmem>>, %arg7: memref<144x128xf32, #tpu.memory_space<vmem>>) attributes {dimension_semantics = [#tpu.dimension_semantics<parallel>, #tpu.dimension_semantics<arbitrary>], iteration_bounds = array<i64: 1, 1>, scalar_prefetch = 0 : i64, scratch_operands = 1 : i64, tpu.core_type = #tpu.core_type<tc>, window_params = [{transform_indices = @transform_0, window_bounds = array<i64: 256, 128>}, {transform_indices = @transform_1, window_bounds = array<i64: 256, 128>}, {pipeline_mode = #tpu.pipeline_mode<synchronous>, transform_indices = @transform_2, window_bounds = array<i64: 144, 256>}, {pipeline_mode = #tpu.pipeline_mode<synchronous>, transform_indices = @transform_3, window_bounds = array<i64: 144, 256>}, {transform_indices = @transform_4, window_bounds = array<i64: 1, 8, 128>}]} {
    %c0_i32 = arith.constant 0 : i32
    %0 = arith.cmpi eq, %arg1, %c0_i32 : i32
    %1 = arith.extui %0 : i1 to i32
    %c0_i32_0 = arith.constant 0 : i32
    %2 = arith.cmpi ne, %1, %c0_i32_0 : i32
    scf.if %2 {
      %cst_17 = arith.constant 0.000000e+00 : f32
      %21 = vector.broadcast %cst_17 : f32 to vector<144x128xf32>
      %c0_18 = arith.constant 0 : index
      %c0_19 = arith.constant 0 : index
      %22 = vector.load %arg7[%c0_18, %c0_19] : memref<144x128xf32, #tpu.memory_space<vmem>>, vector<144x128xf32>
      tpu.vector_store %arg7[%c0_18, %c0_19], %21 {strides = array<i32>} : memref<144x128xf32, #tpu.memory_space<vmem>>, vector<144x128xf32>,
    } else {
    }
    %c0 = arith.constant 0 : index
    %c0_1 = arith.constant 0 : index
    %3 = vector.load %arg4[%c0, %c0_1] : memref<144x256xf32, #tpu.memory_space<vmem>>, vector<144x256xf32>
    %c0_2 = arith.constant 0 : index
    %c0_3 = arith.constant 0 : index
    %4 = vector.load %arg5[%c0_2, %c0_3] : memref<144x256xf32, #tpu.memory_space<vmem>>, vector<144x256xf32>
    %c0_4 = arith.constant 0 : index
    %c0_5 = arith.constant 0 : index
    %5 = vector.load %arg2[%c0_4, %c0_5] : memref<256x128xf32, #tpu.memory_space<vmem>>, vector<256x128xf32>
    %c0_6 = arith.constant 0 : index
    %c0_7 = arith.constant 0 : index
    %6 = vector.load %arg3[%c0_6, %c0_7] : memref<256x128xf32, #tpu.memory_space<vmem>>, vector<256x128xf32>
    %cst = arith.constant dense<0.000000e+00> : vector<144x128xf32>
    %7 = tpu.matmul %3, %5, %cst {dimension_numbers = #tpu.dot_dimension_numbers<[1], [0], [0], [1], [0, 0, 1, 1], [], []>} : vector<144x256xf32>, vector<256x128xf32>, vector<144x128xf32> -> vector<144x128xf32>
    %cst_8 = arith.constant dense<0.000000e+00> : vector<144x128xf32>
    %8 = tpu.matmul %4, %5, %cst_8 {dimension_numbers = #tpu.dot_dimension_numbers<[1], [0], [0], [1], [0, 0, 1, 1], [], []>} : vector<144x256xf32>, vector<256x128xf32>, vector<144x128xf32> -> vector<144x128xf32>
    %cst_9 = arith.constant dense<0.000000e+00> : vector<144x128xf32>
    %9 = tpu.matmul %3, %6, %cst_9 {dimension_numbers = #tpu.dot_dimension_numbers<[1], [0], [0], [1], [0, 0, 1, 1], [], []>} : vector<144x256xf32>, vector<256x128xf32>, vector<144x128xf32> -> vector<144x128xf32>
    %cst_10 = arith.constant dense<0.000000e+00> : vector<144x128xf32>
    %10 = tpu.matmul %4, %6, %cst_10 {dimension_numbers = #tpu.dot_dimension_numbers<[1], [0], [0], [1], [0, 0, 1, 1], [], []>} : vector<144x256xf32>, vector<256x128xf32>, vector<144x128xf32> -> vector<144x128xf32>
    %11 = math.atan2 %8, %7 : vector<144x128xf32>
    %12 = math.atan2 %10, %9 : vector<144x128xf32>
    %c0_11 = arith.constant 0 : index
    %c0_12 = arith.constant 0 : index
    %13 = vector.load %arg7[%c0_11, %c0_12] : memref<144x128xf32, #tpu.memory_space<vmem>>, vector<144x128xf32>
    %14 = arith.subf %11, %12 : vector<144x128xf32>
    %15 = math.absf %14 : vector<144x128xf32>
    %16 = arith.addf %13, %15 : vector<144x128xf32>
    %c0_13 = arith.constant 0 : index
    %c0_14 = arith.constant 0 : index
    %17 = vector.load %arg7[%c0_13, %c0_14] : memref<144x128xf32, #tpu.memory_space<vmem>>, vector<144x128xf32>
    tpu.vector_store %arg7[%c0_13, %c0_14], %16 {strides = array<i32>} : memref<144x128xf32, #tpu.memory_space<vmem>>, vector<144x128xf32>,
    %c0_i32_15 = arith.constant 0 : i32
    %18 = arith.cmpi eq, %arg1, %c0_i32_15 : i32
    %19 = arith.extui %18 : i1 to i32
    %c0_i32_16 = arith.constant 0 : i32
    %20 = arith.cmpi ne, %19, %c0_i32_16 : i32
    scf.if %20 {
      %c0_17 = arith.constant 0 : index
      %c0_18 = arith.constant 0 : index
      %21 = vector.load %arg7[%c0_17, %c0_18] : memref<144x128xf32, #tpu.memory_space<vmem>>, vector<144x128xf32>
      %22 = vector.shape_cast %21 : vector<144x128xf32> to vector<1x144x128xf32>
      %cst_19 = arith.constant dense<0.000000e+00> : vector<1xf32>
      %23 = vector.multi_reduction <add>, %22, %cst_19 [1, 2] : vector<1x144x128xf32> to vector<1xf32>
      %24 = vector.shape_cast %23 : vector<1xf32> to vector<1x1x1xf32>
      %25 = vector.extract %24[0, 0, 0] : f32 from vector<1x1x1xf32>
      %26 = vector.broadcast %25 : f32 to vector<1x8x128xf32>
      %c0_20 = arith.constant 0 : index
      %c0_21 = arith.constant 0 : index
      %c0_22 = arith.constant 0 : index
      %27 = vector.load %arg6[%c0_20, %c0_21, %c0_22] : memref<1x8x128xf32, #tpu.memory_space<vmem>>, vector<1x8x128xf32>
      tpu.vector_store %arg6[%c0_20, %c0_21, %c0_22], %26 {strides = array<i32>} : memref<1x8x128xf32, #tpu.memory_space<vmem>>, vector<1x8x128xf32>,
    } else {
    }
    return
  }
  func.func @transform_0(%arg0: i32, %arg1: i32) -> (i32, i32) {
    %c1_i32 = arith.constant 1 : i32
    %0 = arith.muli %arg0, %c1_i32 : i32
    %1 = arith.addi %0, %arg1 : i32
    %c0_i32 = arith.constant 0 : i32
    %c0_i32_0 = arith.constant 0 : i32
    return %c0_i32, %1 : i32, i32
  }
  func.func @transform_1(%arg0: i32, %arg1: i32) -> (i32, i32) {
    %c1_i32 = arith.constant 1 : i32
    %0 = arith.muli %arg0, %c1_i32 : i32
    %1 = arith.addi %0, %arg1 : i32
    %c0_i32 = arith.constant 0 : i32
    %c0_i32_0 = arith.constant 0 : i32
    return %c0_i32, %1 : i32, i32
  }
  func.func @transform_2(%arg0: i32, %arg1: i32) -> (i32, i32) {
    %c0_i32 = arith.constant 0 : i32
    %c0_i32_0 = arith.constant 0 : i32
    %c0_i32_1 = arith.constant 0 : i32
    return %c0_i32, %c0_i32_0 : i32, i32
  }
  func.func @transform_3(%arg0: i32, %arg1: i32) -> (i32, i32) {
    %c0_i32 = arith.constant 0 : i32
    %c0_i32_0 = arith.constant 0 : i32
    %c0_i32_1 = arith.constant 0 : i32
    return %c0_i32, %c0_i32_0 : i32, i32
  }
  func.func @transform_4(%arg0: i32, %arg1: i32) -> (i32, i32, i32) {
    %c0_i32 = arith.constant 0 : i32
    %c0_i32_0 = arith.constant 0 : i32
    %c0_i32_1 = arith.constant 0 : i32
    return %arg0, %c0_i32, %c0_i32_0 : i32, i32, i32
  }
}

</mosaic_0001>

<llo_original>
// kernel: tpu_custom_call.1
$region0: #{tpu_custom_call.1}
  #allocation0 [shape = 'u32[]', space=smem, size = 0x4, offset = 0x4, fixed_abs, tag = 'smem constant byte address 0x4 - core index']
  #allocation1 [shape = 'u32[144,128]{1,0:T(1,128)}', space=vmem, size = 0x12000, scoped, tag = 'internal scratch']
  #allocation2 [shape = 'f32[144,128]{1,0:T(8,128)}', space=vmem, size = 0x12000, scoped, tag = 'scratch operand']
  %s0 = inlined_call_operand.hbm [shape: f32[256,128], index: 0, kind: input, shape index: {}]
  %s1 = inlined_call_operand.hbm [shape: f32[256,128], index: 1, kind: input, shape index: {}]
  %s2 = inlined_call_operand.hbm [shape: f32[144,256], index: 2, kind: input, shape index: {}]
  %s3 = inlined_call_operand.hbm [shape: f32[144,256], index: 3, kind: input, shape index: {}]
  %s4 = inlined_call_operand.hbm [shape: f32[1,8,128], index: 4, kind: output, shape index: {}]
  %s5 = sld [smem:[#allocation0]]
  $region50: #{tpu_custom_call.1} parent=0
    _
  %s7 = ssub.s32 1, %s5
  %s8 = scalar_select 0, %s7, %s5
  $region1: #{tpu_custom_call.1} parent=0
    #allocation3 [shape = 'u8[131072]{0}', space=vmem, size = 0x20000, scoped, tag = 'input window, operand 0, single buffered']
    #allocation4 [shape = 's32[1]{0}', space=sflag, size = 0x4, scoped, tag = 'scoped memory for tpu_custom_call.1']
    #allocation5 [shape = 's32[1]{0}', space=sflag, size = 0x4, scoped, tag = 'scoped memory for tpu_custom_call.1']
    #allocation6 [shape = 'u8[131072]{0}', space=vmem, size = 0x20000, scoped, tag = 'input window, operand 1, single buffered']
    #allocation7 [shape = 's32[1]{0}', space=sflag, size = 0x4, scoped, tag = 'scoped memory for tpu_custom_call.1']
    #allocation8 [shape = 'u8[147456]{0}', space=vmem, size = 0x24000, scoped, tag = 'input window, operand 2, single buffered']
    #allocation9 [shape = 'u8[147456]{0}', space=vmem, size = 0x24000, scoped, tag = 'input window, operand 3, single buffered']
    #allocation10 [shape = 's32[1]{0}', space=sflag, size = 0x4, scoped, tag = 'scoped memory for tpu_custom_call.1']
    #allocation11 [shape = 'u8[4096]{0}', space=vmem, size = 0x1000, scoped, tag = 'output window, operand 0, single buffered']
    %9 = vsyncpa [#allocation4], 0
    %10 = vsyncpa [#allocation7], 0
    %11 = vsyncpa [#allocation10], 0
    %12 = vsyncpa [#allocation5], 0
    // Predicated region
    $region2: #{tpu_custom_call.1} parent=1 // pred_check
      _
    $region3: #{tpu_custom_call.1} parent=1 // pred_check_branch
      %14 = sbr.rel (0) target = $region5
    $region4: #{tpu_custom_call.1} parent=1 // pred_region
      %s15 = sadd.s32 0, 0
      %s17 = ssub.s32 4096, 4096
      %18 = vsyncadd [#allocation4], %s17
      %s19 = smul.addr %s15, 128
      %s20 = scalar_lea.hbm %s0, %s19
      %s21 = sshll.u32 [#allocation3], 4
      %s22 = int_to_ptr.vmem [resolvable:$true] %s21
      %27 = dma.hbm_to_vmem [thread:$0]  %s20, 4096, %s22, [#allocation4], 128, 128, 8
    $region5: #{tpu_custom_call.1} parent=1 // pred_fallthru
      _
    // Predicated region
    $region6: #{tpu_custom_call.1} parent=1 // pred_check
      _
    $region7: #{tpu_custom_call.1} parent=1 // pred_check_branch
      %29 = sbr.rel (0) target = $region9
    $region8: #{tpu_custom_call.1} parent=1 // pred_region
      %s30 = sadd.s32 0, 0
      %s32 = ssub.s32 4096, 4096
      %33 = vsyncadd [#allocation7], %s32
      %s34 = smul.addr %s30, 128
      %s35 = scalar_lea.hbm %s1, %s34
      %s36 = sshll.u32 [#allocation6], 4
      %s37 = int_to_ptr.vmem [resolvable:$true] %s36
      %42 = dma.hbm_to_vmem [thread:$0]  %s35, 4096, %s37, [#allocation7], 128, 128, 8
    $region9: #{tpu_custom_call.1} parent=1 // pred_fallthru
      _
    // Predicated region
    $region10: #{tpu_custom_call.1} parent=1 // pred_check
      _
    $region11: #{tpu_custom_call.1} parent=1 // pred_check_branch
      %44 = sbr.rel (0) target = $region13
    $region12: #{tpu_custom_call.1} parent=1 // pred_region
      %s46 = ssub.s32 4608, 4608
      %47 = vsyncadd [#allocation7], %s46
      %s48 = sshll.u32 [#allocation8], 4
      %s49 = int_to_ptr.vmem [resolvable:$true] %s48
      %54 = dma.hbm_to_vmem [thread:$0]  %s2, 4608, %s49, [#allocation7], 256, 256, 16
    $region13: #{tpu_custom_call.1} parent=1 // pred_fallthru
      _
    // Predicated region
    $region14: #{tpu_custom_call.1} parent=1 // pred_check
      _
    $region15: #{tpu_custom_call.1} parent=1 // pred_check_branch
      %56 = sbr.rel (0) target = $region17
    $region16: #{tpu_custom_call.1} parent=1 // pred_region
      %s58 = ssub.s32 4608, 4608
      %59 = vsyncadd [#allocation10], %s58
      %s60 = sshll.u32 [#allocation9], 4
      %s61 = int_to_ptr.vmem [resolvable:$true] %s60
      %66 = dma.hbm_to_vmem [thread:$0]  %s3, 4608, %s61, [#allocation10], 256, 256, 16
    $region17: #{tpu_custom_call.1} parent=1 // pred_fallthru
      _
    // Predicated region
    $region18: #{tpu_custom_call.1} parent=1 // pred_check
      _
    $region19: #{tpu_custom_call.1} parent=1 // pred_check_branch
      %68 = sbr.rel (0) target = $region21
    $region20: #{tpu_custom_call.1} parent=1 // pred_region
      %69 = dma.done [#allocation4], 4096
    $region21: #{tpu_custom_call.1} parent=1 // pred_fallthru
      _
    // Predicated region
    $region22: #{tpu_custom_call.1} parent=1 // pred_check
      _
    $region23: #{tpu_custom_call.1} parent=1 // pred_check_branch
      %71 = sbr.rel (0) target = $region25
    $region24: #{tpu_custom_call.1} parent=1 // pred_region
      %72 = dma.done [#allocation7], 4096
    $region25: #{tpu_custom_call.1} parent=1 // pred_fallthru
      _
    // Predicated region
    $region26: #{tpu_custom_call.1} parent=1 // pred_check
      _
    $region27: #{tpu_custom_call.1} parent=1 // pred_check_branch
      %74 = sbr.rel (0) target = $region29
    $region28: #{tpu_custom_call.1} parent=1 // pred_region
      %75 = dma.done [#allocation7], 4608
    $region29: #{tpu_custom_call.1} parent=1 // pred_fallthru
      _
    // Predicated region
    $region30: #{tpu_custom_call.1} parent=1 // pred_check
      _
    $region31: #{tpu_custom_call.1} parent=1 // pred_check_branch
      %77 = sbr.rel (0) target = $region33
    $region32: #{tpu_custom_call.1} parent=1 // pred_region
      %78 = dma.done [#allocation10], 4608
    $region33: #{tpu_custom_call.1} parent=1 // pred_fallthru
      _
    %s79 = sadd.s32 0, 0
    %s80 = sadd.s32 0, 0
    %p81 = scmp.eq.s32.totalorder 0, 0
    // Predicated region
    $region34: #{tpu_custom_call.1} parent=1 // pred_check
      %p82 = pneg %p81
    $region35: #{tpu_custom_call.1} parent=1 // pred_check_branch
      %84 = sbr.rel (%p82) target = $region37
    $region36: #{tpu_custom_call.1} parent=1 // pred_region
      %85 = vst [vmem:[#allocation2] sm:$0xff] 0.0
      %86 = vst [vmem:[#allocation2 + $0x8] sm:$0xff] 0.0
      %87 = vst [vmem:[#allocation2 + $0x10] sm:$0xff] 0.0
      %88 = vst [vmem:[#allocation2 + $0x18] sm:$0xff] 0.0
      %89 = vst [vmem:[#allocation2 + $0x20] sm:$0xff] 0.0
      %90 = vst [vmem:[#allocation2 + $0x28] sm:$0xff] 0.0
      %91 = vst [vmem:[#allocation2 + $0x30] sm:$0xff] 0.0
      %92 = vst [vmem:[#allocation2 + $0x38] sm:$0xff] 0.0
      %93 = vst [vmem:[#allocation2 + $0x40] sm:$0xff] 0.0
      %94 = vst [vmem:[#allocation2 + $0x48] sm:$0xff] 0.0
      %95 = vst [vmem:[#allocation2 + $0x50] sm:$0xff] 0.0
      %96 = vst [vmem:[#allocation2 + $0x58] sm:$0xff] 0.0
      %97 = vst [vmem:[#allocation2 + $0x60] sm:$0xff] 0.0
      %98 = vst [vmem:[#allocation2 + $0x68] sm:$0xff] 0.0
      %99 = vst [vmem:[#allocation2 + $0x70] sm:$0xff] 0.0
      %100 = vst [vmem:[#allocation2 + $0x78] sm:$0xff] 0.0
      %101 = vst [vmem:[#allocation2 + $0x80] sm:$0xff] 0.0
      %102 = vst [vmem:[#allocation2 + $0x88] sm:$0xff] 0.0
    $region37: #{tpu_custom_call.1} parent=1 // pred_fallthru
      _
    %v103 = vld [vmem:[#allocation8] sm:$0xff]
    %v104 = vld [vmem:[#allocation8 + $0x8] sm:$0xff]
    %v105 = vld [vmem:[#allocation8 + $0x10] sm:$0xff]
    %v106 = vld [vmem:[#allocation8 + $0x18] sm:$0xff]
    %v107 = vld [vmem:[#allocation8 + $0x20] sm:$0xff]
    %v108 = vld [vmem:[#allocation8 + $0x28] sm:$0xff]
    %v109 = vld [vmem:[#allocation8 + $0x30] sm:$0xff]
    %v110 = vld [vmem:[#allocation8 + $0x38] sm:$0xff]
    %v111 = vld [vmem:[#allocation8 + $0x40] sm:$0xff]
    %v112 = vld [vmem:[#allocation8 + $0x48] sm:$0xff]
    %v113 = vld [vmem:[#allocation8 + $0x50] sm:$0xff]
    %v114 = vld [vmem:[#allocation8 + $0x58] sm:$0xff]
    %v115 = vld [vmem:[#allocation8 + $0x60] sm:$0xff]
    %v116 = vld [vmem:[#allocation8 + $0x68] sm:$0xff]
    %v117 = vld [vmem:[#allocation8 + $0x70] sm:$0xff]
    %v118 = vld [vmem:[#allocation8 + $0x78] sm:$0xff]
    %v119 = vld [vmem:[#allocation8 + $0x80] sm:$0xff]
    %v120 = vld [vmem:[#allocation8 + $0x88] sm:$0xff]
    %v121 = vld [vmem:[#allocation8 + $0x90] sm:$0xff]
    %v122 = vld [vmem:[#allocation8 + $0x98] sm:$0xff]
    %v123 = vld [vmem:[#allocation8 + $0xa0] sm:$0xff]
    %v124 = vld [vmem:[#allocation8 + $0xa8] sm:$0xff]
    %v125 = vld [vmem:[#allocation8 + $0xb0] sm:$0xff]
    %v126 = vld [vmem:[#allocation8 + $0xb8] sm:$0xff]
    %v127 = vld [vmem:[#allocation8 + $0xc0] sm:$0xff]
    %v128 = vld [vmem:[#allocation8 + $0xc8] sm:$0xff]
    %v129 = vld [vmem:[#allocation8 + $0xd0] sm:$0xff]
    %v130 = vld [vmem:[#allocation8 + $0xd8] sm:$0xff]
    %v131 = vld [vmem:[#allocation8 + $0xe0] sm:$0xff]
    %v132 = vld [vmem:[#allocation8 + $0xe8] sm:$0xff]
    %v133 = vld [vmem:[#allocation8 + $0xf0] sm:$0xff]
    %v134 = vld [vmem:[#allocation8 + $0xf8] sm:$0xff]
    %v135 = vld [vmem:[#allocation8 + $0x100] sm:$0xff]
    %v136 = vld [vmem:[#allocation8 + $0x108] sm:$0xff]
    %v137 = vld [vmem:[#allocation8 + $0x110] sm:$0xff]
    %v138 = vld [vmem:[#allocation8 + $0x118] sm:$0xff]
    %v139 = vld [vmem:[#allocation9] sm:$0xff]
    %v140 = vld [vmem:[#allocation9 + $0x8] sm:$0xff]
    %v141 = vld [vmem:[#allocation9 + $0x10] sm:$0xff]
    %v142 = vld [vmem:[#allocation9 + $0x18] sm:$0xff]
    %v143 = vld [vmem:[#allocation9 + $0x20] sm:$0xff]
    %v144 = vld [vmem:[#allocation9 + $0x28] sm:$0xff]
    %v145 = vld [vmem:[#allocation9 + $0x30] sm:$0xff]
    %v146 = vld [vmem:[#allocation9 + $0x38] sm:$0xff]
    %v147 = vld [vmem:[#allocation9 + $0x40] sm:$0xff]
    %v148 = vld [vmem:[#allocation9 + $0x48] sm:$0xff]
    %v149 = vld [vmem:[#allocation9 + $0x50] sm:$0xff]
    %v150 = vld [vmem:[#allocation9 + $0x58] sm:$0xff]
    %v151 = vld [vmem:[#allocation9 + $0x60] sm:$0xff]
    %v152 = vld [vmem:[#allocation9 + $0x68] sm:$0xff]
    %v153 = vld [vmem:[#allocation9 + $0x70] sm:$0xff]
    %v154 = vld [vmem:[#allocation9 + $0x78] sm:$0xff]
    %v155 = vld [vmem:[#allocation9 + $0x80] sm:$0xff]
    %v156 = vld [vmem:[#allocation9 + $0x88] sm:$0xff]
    %v157 = vld [vmem:[#allocation9 + $0x90] sm:$0xff]
    %v158 = vld [vmem:[#allocation9 + $0x98] sm:$0xff]
    %v159 = vld [vmem:[#allocation9 + $0xa0] sm:$0xff]
    %v160 = vld [vmem:[#allocation9 + $0xa8] sm:$0xff]
    %v161 = vld [vmem:[#allocation9 + $0xb0] sm:$0xff]
    %v162 = vld [vmem:[#allocation9 + $0xb8] sm:$0xff]
    %v163 = vld [vmem:[#allocation9 + $0xc0] sm:$0xff]
    %v164 = vld [vmem:[#allocation9 + $0xc8] sm:$0xff]
    %v165 = vld [vmem:[#allocation9 + $0xd0] sm:$0xff]
    %v166 = vld [vmem:[#allocation9 + $0xd8] sm:$0xff]
    %v167 = vld [vmem:[#allocation9 + $0xe0] sm:$0xff]
    %v168 = vld [vmem:[#allocation9 + $0xe8] sm:$0xff]
    %v169 = vld [vmem:[#allocation9 + $0xf0] sm:$0xff]
    %v170 = vld [vmem:[#allocation9 + $0xf8] sm:$0xff]
    %v171 = vld [vmem:[#allocation9 + $0x100] sm:$0xff]
    %v172 = vld [vmem:[#allocation9 + $0x108] sm:$0xff]
    %v173 = vld [vmem:[#allocation9 + $0x110] sm:$0xff]
    %v174 = vld [vmem:[#allocation9 + $0x118] sm:$0xff]
    %v175 = vld [vmem:[#allocation3] sm:$0xff]
    %v176 = vld [vmem:[#allocation3 + $0x8] sm:$0xff]
    %v177 = vld [vmem:[#allocation3 + $0x10] sm:$0xff]
    %v178 = vld [vmem:[#allocation3 + $0x18] sm:$0xff]
    %v179 = vld [vmem:[#allocation3 + $0x20] sm:$0xff]
    %v180 = vld [vmem:[#allocation3 + $0x28] sm:$0xff]
    %v181 = vld [vmem:[#allocation3 + $0x30] sm:$0xff]
    %v182 = vld [vmem:[#allocation3 + $0x38] sm:$0xff]
    %v183 = vld [vmem:[#allocation3 + $0x40] sm:$0xff]
    %v184 = vld [vmem:[#allocation3 + $0x48] sm:$0xff]
    %v185 = vld [vmem:[#allocation3 + $0x50] sm:$0xff]
    %v186 = vld [vmem:[#allocation3 + $0x58] sm:$0xff]
    %v187 = vld [vmem:[#allocation3 + $0x60] sm:$0xff]
    %v188 = vld [vmem:[#allocation3 + $0x68] sm:$0xff]
    %v189 = vld [vmem:[#allocation3 + $0x70] sm:$0xff]
    %v190 = vld [vmem:[#allocation3 + $0x78] sm:$0xff]
    %v191 = vld [vmem:[#allocation3 + $0x80] sm:$0xff]
    %v192 = vld [vmem:[#allocation3 + $0x88] sm:$0xff]
    %v193 = vld [vmem:[#allocation3 + $0x90] sm:$0xff]
    %v194 = vld [vmem:[#allocation3 + $0x98] sm:$0xff]
    %v195 = vld [vmem:[#allocation3 + $0xa0] sm:$0xff]
    %v196 = vld [vmem:[#allocation3 + $0xa8] sm:$0xff]
    %v197 = vld [vmem:[#allocation3 + $0xb0] sm:$0xff]
    %v198 = vld [vmem:[#allocation3 + $0xb8] sm:$0xff]
    %v199 = vld [vmem:[#allocation3 + $0xc0] sm:$0xff]
    %v200 = vld [vmem:[#allocation3 + $0xc8] sm:$0xff]
    %v201 = vld [vmem:[#allocation3 + $0xd0] sm:$0xff]
    %v202 = vld [vmem:[#allocation3 + $0xd8] sm:$0xff]
    %v203 = vld [vmem:[#allocation3 + $0xe0] sm:$0xff]
    %v204 = vld [vmem:[#allocation3 + $0xe8] sm:$0xff]
    %v205 = vld [vmem:[#allocation3 + $0xf0] sm:$0xff]
    %v206 = vld [vmem:[#allocation3 + $0xf8] sm:$0xff]
    %v207 = vld [vmem:[#allocation6] sm:$0xff]
    %v208 = vld [vmem:[#allocation6 + $0x8] sm:$0xff]
    %v209 = vld [vmem:[#allocation6 + $0x10] sm:$0xff]
    %v210 = vld [vmem:[#allocation6 + $0x18] sm:$0xff]
    %v211 = vld [vmem:[#allocation6 + $0x20] sm:$0xff]
    %v212 = vld [vmem:[#allocation6 + $0x28] sm:$0xff]
    %v213 = vld [vmem:[#allocation6 + $0x30] sm:$0xff]
    %v214 = vld [vmem:[#allocation6 + $0x38] sm:$0xff]
    %v215 = vld [vmem:[#allocation6 + $0x40] sm:$0xff]
    %v216 = vld [vmem:[#allocation6 + $0x48] sm:$0xff]
    %v217 = vld [vmem:[#allocation6 + $0x50] sm:$0xff]
    %v218 = vld [vmem:[#allocation6 + $0x58] sm:$0xff]
    %v219 = vld [vmem:[#allocation6 + $0x60] sm:$0xff]
    %v220 = vld [vmem:[#allocation6 + $0x68] sm:$0xff]
    %v221 = vld [vmem:[#allocation6 + $0x70] sm:$0xff]
    %v222 = vld [vmem:[#allocation6 + $0x78] sm:$0xff]
    %v223 = vld [vmem:[#allocation6 + $0x80] sm:$0xff]
    %v224 = vld [vmem:[#allocation6 + $0x88] sm:$0xff]
    %v225 = vld [vmem:[#allocation6 + $0x90] sm:$0xff]
    %v226 = vld [vmem:[#allocation6 + $0x98] sm:$0xff]
    %v227 = vld [vmem:[#allocation6 + $0xa0] sm:$0xff]
    %v228 = vld [vmem:[#allocation6 + $0xa8] sm:$0xff]
    %v229 = vld [vmem:[#allocation6 + $0xb0] sm:$0xff]
    %v230 = vld [vmem:[#allocation6 + $0xb8] sm:$0xff]
    %v231 = vld [vmem:[#allocation6 + $0xc0] sm:$0xff]
    %v232 = vld [vmem:[#allocation6 + $0xc8] sm:$0xff]
    %v233 = vld [vmem:[#allocation6 + $0xd0] sm:$0xff]
    %v234 = vld [vmem:[#allocation6 + $0xd8] sm:$0xff]
    %v235 = vld [vmem:[#allocation6 + $0xe0] sm:$0xff]
    %v236 = vld [vmem:[#allocation6 + $0xe8] sm:$0xff]
    %v237 = vld [vmem:[#allocation6 + $0xf0] sm:$0xff]
    %v238 = vld [vmem:[#allocation6 + $0xf8] sm:$0xff]
    %239 = vmatprep.subr.mxu0 0.0
    %240 = vmatpush1.msra.mxu0 %v175
    %241 = vmatprep.subr.mxu0 0.0
    %242 = vmatpush1.msra.mxu0 %v176
    %243 = vmatprep.subr.mxu0 0.0
    %244 = vmatpush1.msra.mxu0 %v177
    %245 = vmatprep.subr.mxu0 0.0
    %246 = vmatpush1.msra.mxu0 %v178
    %247 = vmatprep.subr.mxu0 0.0
    %248 = vmatpush1.msra.mxu0 %v179
    %249 = vmatprep.subr.mxu0 0.0
    %250 = vmatpush1.msra.mxu0 %v180
    %251 = vmatprep.subr.mxu0 0.0
    %252 = vmatpush1.msra.mxu0 %v181
    %253 = vmatprep.subr.mxu0 0.0
    %254 = vmatpush1.msra.mxu0 %v182
    %255 = vmatprep.subr.mxu0 0.0
    %256 = vmatpush1.msra.mxu0 %v183
    %257 = vmatprep.subr.mxu0 0.0
    %258 = vmatpush1.msra.mxu0 %v184
    %259 = vmatprep.subr.mxu0 0.0
    %260 = vmatpush1.msra.mxu0 %v185
    %261 = vmatprep.subr.mxu0 0.0
    %262 = vmatpush1.msra.mxu0 %v186
    %263 = vmatprep.subr.mxu0 0.0
    %264 = vmatpush1.msra.mxu0 %v187
    %265 = vmatprep.subr.mxu0 0.0
    %266 = vmatpush1.msra.mxu0 %v188
    %267 = vmatprep.subr.mxu0 0.0
    %268 = vmatpush1.msra.mxu0 %v189
    %269 = vmatprep.subr.mxu0 0.0
    %270 = vmatpush1.msra.mxu0 %v190
    %271 = vmatprep.subr.mxu0 0.0
    %272 = vmatpush1.msra.mxu0 %v191
    %273 = vmatprep.subr.mxu0 0.0
    %274 = vmatpush1.msra.mxu0 %v192
    %275 = vmatprep.subr.mxu0 0.0
    %276 = vmatpush1.msra.mxu0 %v193
    %277 = vmatprep.subr.mxu0 0.0
    %278 = vmatpush1.msra.mxu0 %v194
    %279 = vmatprep.subr.mxu0 0.0
    %280 = vmatpush1.msra.mxu0 %v195
    %281 = vmatprep.subr.mxu0 0.0
    %282 = vmatpush1.msra.mxu0 %v196
    %283 = vmatprep.subr.mxu0 0.0
    %284 = vmatpush1.msra.mxu0 %v197
    %285 = vmatprep.subr.mxu0 0.0
    %286 = vmatpush1.msra.mxu0 %v198
    %287 = vmatprep.subr.mxu0 0.0
    %288 = vmatpush1.msra.mxu0 %v199
    %289 = vmatprep.subr.mxu0 0.0
    %290 = vmatpush1.msra.mxu0 %v200
    %291 = vmatprep.subr.mxu0 0.0
    %292 = vmatpush1.msra.mxu0 %v201
    %293 = vmatprep.subr.mxu0 0.0
    %294 = vmatpush1.msra.mxu0 %v202
    %295 = vmatprep.subr.mxu0 0.0
    %296 = vmatpush1.msra.mxu0 %v203
    %297 = vmatprep.subr.mxu0 0.0
    %298 = vmatpush1.msra.mxu0 %v204
    %299 = vmatprep.subr.mxu0 0.0
    %300 = vmatpush1.msra.mxu0 %v205
    %301 = vmatprep.subr.mxu0 0.0
    %302 = vmatpush1.msra.mxu0 %v206
    %303 = vmatprep.mubr.f32.mxu0 %v104
    %304 = vmatmul.mubr.f32.gmra.mrb[0].mxu0 %v103
    %v305 = vpop.f32.mrb[0].mxu0
    %v306 = vadd.f32 0.0, %v305
    %v307 = vpop.f32.mrb[0].mxu0
    %308 = vmatprep.mubr.f32.mxu0 %v106
    %309 = vmatmul.mubr.f32.gmra.mrb[0].mxu0 %v105
    %v310 = vpop.f32.mrb[0].mxu0
    %v311 = vadd.f32 0.0, %v310
    %v312 = vpop.f32.mrb[0].mxu0
    %313 = vmatprep.mubr.f32.mxu0 %v108
    %314 = vmatmul.mubr.f32.gmra.mrb[0].mxu0 %v107
    %v315 = vpop.f32.mrb[0].mxu0
    %v316 = vadd.f32 0.0, %v315
    %v317 = vpop.f32.mrb[0].mxu0
    %318 = vmatprep.mubr.f32.mxu0 %v110
    %319 = vmatmul.mubr.f32.gmra.mrb[0].mxu0 %v109
    %v320 = vpop.f32.mrb[0].mxu0
    %v321 = vadd.f32 0.0, %v320
    %v322 = vpop.f32.mrb[0].mxu0
    %323 = vmatprep.mubr.f32.mxu0 %v112
    %324 = vmatmul.mubr.f32.gmra.mrb[0].mxu0 %v111
    %v325 = vpop.f32.mrb[0].mxu0
    %v326 = vadd.f32 0.0, %v325
    %v327 = vpop.f32.mrb[0].mxu0
    %328 = vmatprep.mubr.f32.mxu0 %v114
    %329 = vmatmul.mubr.f32.gmra.mrb[0].mxu0 %v113
    %v330 = vpop.f32.mrb[0].mxu0
    %v331 = vadd.f32 0.0, %v330
    %v332 = vpop.f32.mrb[0].mxu0
    %333 = vmatprep.mubr.f32.mxu0 %v116
    %334 = vmatmul.mubr.f32.gmra.mrb[0].mxu0 %v115
    %v335 = vpop.f32.mrb[0].mxu0
    %v336 = vadd.f32 0.0, %v335
    %v337 = vpop.f32.mrb[0].mxu0
    %338 = vmatprep.mubr.f32.mxu0 %v118
    %339 = vmatmul.mubr.f32.gmra.mrb[0].mxu0 %v117
    %v340 = vpop.f32.mrb[0].mxu0
    %v341 = vadd.f32 0.0, %v340
    %v342 = vpop.f32.mrb[0].mxu0
    %343 = vmatprep.mubr.f32.mxu0 %v120
    %344 = vmatmul.mubr.f32.gmra.mrb[0].mxu0 %v119
    %v345 = vpop.f32.mrb[0].mxu0
    %v346 = vadd.f32 0.0, %v345
    %v347 = vpop.f32.mrb[0].mxu0
    %348 = vmatprep.mubr.f32.mxu0 %v122
    %349 = vmatmul.mubr.f32.gmra.mrb[0].mxu0 %v121
    %v350 = vpop.f32.mrb[0].mxu0
    %v351 = vadd.f32 0.0, %v350
    %v352 = vpop.f32.mrb[0].mxu0
    %353 = vmatprep.mubr.f32.mxu0 %v124
    %354 = vmatmul.mubr.f32.gmra.mrb[0].mxu0 %v123
    %v355 = vpop.f32.mrb[0].mxu0
    %v356 = vadd.f32 0.0, %v355
    %v357 = vpop.f32.mrb[0].mxu0
    %358 = vmatprep.mubr.f32.mxu0 %v126
    %359 = vmatmul.mubr.f32.gmra.mrb[0].mxu0 %v125
    %v360 = vpop.f32.mrb[0].mxu0
    %v361 = vadd.f32 0.0, %v360
    %v362 = vpop.f32.mrb[0].mxu0
    %363 = vmatprep.mubr.f32.mxu0 %v128
    %364 = vmatmul.mubr.f32.gmra.mrb[0].mxu0 %v127
    %v365 = vpop.f32.mrb[0].mxu0
    %v366 = vadd.f32 0.0, %v365
    %v367 = vpop.f32.mrb[0].mxu0
    %368 = vmatprep.mubr.f32.mxu0 %v130
    %369 = vmatmul.mubr.f32.gmra.mrb[0].mxu0 %v129
    %v370 = vpop.f32.mrb[0].mxu0
    %v371 = vadd.f32 0.0, %v370
    %v372 = vpop.f32.mrb[0].mxu0
    %373 = vmatprep.mubr.f32.mxu0 %v132
    %374 = vmatmul.mubr.f32.gmra.mrb[0].mxu0 %v131
    %v375 = vpop.f32.mrb[0].mxu0
    %v376 = vadd.f32 0.0, %v375
    %v377 = vpop.f32.mrb[0].mxu0
    %378 = vmatprep.mubr.f32.mxu0 %v134
    %379 = vmatmul.mubr.f32.gmra.mrb[0].mxu0 %v133
    %v380 = vpop.f32.mrb[0].mxu0
    %v381 = vadd.f32 0.0, %v380
    %v382 = vpop.f32.mrb[0].mxu0
    %383 = vmatprep.mubr.f32.mxu0 %v136
    %384 = vmatmul.mubr.f32.gmra.mrb[0].mxu0 %v135
    %v385 = vpop.f32.mrb[0].mxu0
    %v386 = vadd.f32 0.0, %v385
    %v387 = vpop.f32.mrb[0].mxu0
    %388 = vmatprep.mubr.f32.mxu0 %v138
    %389 = vmatmul.mubr.f32.gmra.mrb[0].mxu0 %v137
    %v390 = vpop.f32.mrb[0].mxu0
    %v391 = vadd.f32 0.0, %v390
    %v392 = vpop.f32.mrb[0].mxu0
    %393 = vdwg.mxu0
    %394 = vmatprep.subr.mxu0 0.0
    %395 = vmatpush1.msra.mxu0 %v175
    %396 = vmatprep.subr.mxu0 0.0
    %397 = vmatpush1.msra.mxu0 %v176
    %398 = vmatprep.subr.mxu0 0.0
    %399 = vmatpush1.msra.mxu0 %v177
    %400 = vmatprep.subr.mxu0 0.0
    %401 = vmatpush1.msra.mxu0 %v178
    %402 = vmatprep.subr.mxu0 0.0
    %403 = vmatpush1.msra.mxu0 %v179
    %404 = vmatprep.subr.mxu0 0.0
    %405 = vmatpush1.msra.mxu0 %v180
    %406 = vmatprep.subr.mxu0 0.0
    %407 = vmatpush1.msra.mxu0 %v181
    %408 = vmatprep.subr.mxu0 0.0
    %409 = vmatpush1.msra.mxu0 %v182
    %410 = vmatprep.subr.mxu0 0.0
    %411 = vmatpush1.msra.mxu0 %v183
    %412 = vmatprep.subr.mxu0 0.0
    %413 = vmatpush1.msra.mxu0 %v184
    %414 = vmatprep.subr.mxu0 0.0
    %415 = vmatpush1.msra.mxu0 %v185
    %416 = vmatprep.subr.mxu0 0.0
    %417 = vmatpush1.msra.mxu0 %v186
    %418 = vmatprep.subr.mxu0 0.0
    %419 = vmatpush1.msra.mxu0 %v187
    %420 = vmatprep.subr.mxu0 0.0
    %421 = vmatpush1.msra.mxu0 %v188
    %422 = vmatprep.subr.mxu0 0.0
    %423 = vmatpush1.msra.mxu0 %v189
    %424 = vmatprep.subr.mxu0 0.0
    %425 = vmatpush1.msra.mxu0 %v190
    %426 = vmatprep.subr.mxu0 0.0
    %427 = vmatpush1.msra.mxu0 %v191
    %428 = vmatprep.subr.mxu0 0.0
    %429 = vmatpush1.msra.mxu0 %v192
    %430 = vmatprep.subr.mxu0 0.0
    %431 = vmatpush1.msra.mxu0 %v193
    %432 = vmatprep.subr.mxu0 0.0
    %433 = vmatpush1.msra.mxu0 %v194
    %434 = vmatprep.subr.mxu0 0.0
    %435 = vmatpush1.msra.mxu0 %v195
    %436 = vmatprep.subr.mxu0 0.0
    %437 = vmatpush1.msra.mxu0 %v196
    %438 = vmatprep.subr.mxu0 0.0
    %439 = vmatpush1.msra.mxu0 %v197
    %440 = vmatprep.subr.mxu0 0.0
    %441 = vmatpush1.msra.mxu0 %v198
    %442 = vmatprep.subr.mxu0 0.0
    %443 = vmatpush1.msra.mxu0 %v199
    %444 = vmatprep.subr.mxu0 0.0
    %445 = vmatpush1.msra.mxu0 %v200
    %446 = vmatprep.subr.mxu0 0.0
    %447 = vmatpush1.msra.mxu0 %v201
    %448 = vmatprep.subr.mxu0 0.0
    %449 = vmatpush1.msra.mxu0 %v202
    %450 = vmatprep.subr.mxu0 0.0
    %451 = vmatpush1.msra.mxu0 %v203
    %452 = vmatprep.subr.mxu0 0.0
    %453 = vmatpush1.msra.mxu0 %v204
    %454 = vmatprep.subr.mxu0 0.0
    %455 = vmatpush1.msra.mxu0 %v205
    %456 = vmatprep.subr.mxu0 0.0
    %457 = vmatpush1.msra.mxu0 %v206
    %458 = vmatprep.mubr.f32.mxu0 %v140
    %459 = vmatmul.mubr.f32.gmra.mrb[0].mxu0 %v139
    %v460 = vpop.f32.mrb[0].mxu0
    %v461 = vadd.f32 0.0, %v460
    %v462 = vpop.f32.mrb[0].mxu0
    %463 = vmatprep.mubr.f32.mxu0 %v142
    %464 = vmatmul.mubr.f32.gmra.mrb[0].mxu0 %v141
    %v465 = vpop.f32.mrb[0].mxu0
    %v466 = vadd.f32 0.0, %v465
    %v467 = vpop.f32.mrb[0].mxu0
    %468 = vmatprep.mubr.f32.mxu0 %v144
    %469 = vmatmul.mubr.f32.gmra.mrb[0].mxu0 %v143
    %v470 = vpop.f32.mrb[0].mxu0
    %v471 = vadd.f32 0.0, %v470
    %v472 = vpop.f32.mrb[0].mxu0
    %473 = vmatprep.mubr.f32.mxu0 %v146
    %474 = vmatmul.mubr.f32.gmra.mrb[0].mxu0 %v145
    %v475 = vpop.f32.mrb[0].mxu0
    %v476 = vadd.f32 0.0, %v475
    %v477 = vpop.f32.mrb[0].mxu0
    %478 = vmatprep.mubr.f32.mxu0 %v148
    %479 = vmatmul.mubr.f32.gmra.mrb[0].mxu0 %v147
    %v480 = vpop.f32.mrb[0].mxu0
    %v481 = vadd.f32 0.0, %v480
    %v482 = vpop.f32.mrb[0].mxu0
    %483 = vmatprep.mubr.f32.mxu0 %v150
    %484 = vmatmul.mubr.f32.gmra.mrb[0].mxu0 %v149
    %v485 = vpop.f32.mrb[0].mxu0
    %v486 = vadd.f32 0.0, %v485
    %v487 = vpop.f32.mrb[0].mxu0
    %488 = vmatprep.mubr.f32.mxu0 %v152
    %489 = vmatmul.mubr.f32.gmra.mrb[0].mxu0 %v151
    %v490 = vpop.f32.mrb[0].mxu0
    %v491 = vadd.f32 0.0, %v490
    %v492 = vpop.f32.mrb[0].mxu0
    %493 = vmatprep.mubr.f32.mxu0 %v154
    %494 = vmatmul.mubr.f32.gmra.mrb[0].mxu0 %v153
    %v495 = vpop.f32.mrb[0].mxu0
    %v496 = vadd.f32 0.0, %v495
    %v497 = vpop.f32.mrb[0].mxu0
    %498 = vmatprep.mubr.f32.mxu0 %v156
    %499 = vmatmul.mubr.f32.gmra.mrb[0].mxu0 %v155
    %v500 = vpop.f32.mrb[0].mxu0
    %v501 = vadd.f32 0.0, %v500
    %v502 = vpop.f32.mrb[0].mxu0
    %503 = vmatprep.mubr.f32.mxu0 %v158
    %504 = vmatmul.mubr.f32.gmra.mrb[0].mxu0 %v157
    %v505 = vpop.f32.mrb[0].mxu0
    %v506 = vadd.f32 0.0, %v505
    %v507 = vpop.f32.mrb[0].mxu0
    %508 = vmatprep.mubr.f32.mxu0 %v160
    %509 = vmatmul.mubr.f32.gmra.mrb[0].mxu0 %v159
    %v510 = vpop.f32.mrb[0].mxu0
    %v511 = vadd.f32 0.0, %v510
    %v512 = vpop.f32.mrb[0].mxu0
    %513 = vmatprep.mubr.f32.mxu0 %v162
    %514 = vmatmul.mubr.f32.gmra.mrb[0].mxu0 %v161
    %v515 = vpop.f32.mrb[0].mxu0
    %v516 = vadd.f32 0.0, %v515
    %v517 = vpop.f32.mrb[0].mxu0
    %518 = vmatprep.mubr.f32.mxu0 %v164
    %519 = vmatmul.mubr.f32.gmra.mrb[0].mxu0 %v163
    %v520 = vpop.f32.mrb[0].mxu0
    %v521 = vadd.f32 0.0, %v520
    %v522 = vpop.f32.mrb[0].mxu0
    %523 = vmatprep.mubr.f32.mxu0 %v166
    %524 = vmatmul.mubr.f32.gmra.mrb[0].mxu0 %v165
    %v525 = vpop.f32.mrb[0].mxu0
    %v526 = vadd.f32 0.0, %v525
    %v527 = vpop.f32.mrb[0].mxu0
    %528 = vmatprep.mubr.f32.mxu0 %v168
    %529 = vmatmul.mubr.f32.gmra.mrb[0].mxu0 %v167
    %v530 = vpop.f32.mrb[0].mxu0
    %v531 = vadd.f32 0.0, %v530
    %v532 = vpop.f32.mrb[0].mxu0
    %533 = vmatprep.mubr.f32.mxu0 %v170
    %534 = vmatmul.mubr.f32.gmra.mrb[0].mxu0 %v169
    %v535 = vpop.f32.mrb[0].mxu0
    %v536 = vadd.f32 0.0, %v535
    %v537 = vpop.f32.mrb[0].mxu0
    %538 = vmatprep.mubr.f32.mxu0 %v172
    %539 = vmatmul.mubr.f32.gmra.mrb[0].mxu0 %v171
    %v540 = vpop.f32.mrb[0].mxu0
    %v541 = vadd.f32 0.0, %v540
    %v542 = vpop.f32.mrb[0].mxu0
    %543 = vmatprep.mubr.f32.mxu0 %v174
    %544 = vmatmul.mubr.f32.gmra.mrb[0].mxu0 %v173
    %v545 = vpop.f32.mrb[0].mxu0
    %v546 = vadd.f32 0.0, %v545
    %v547 = vpop.f32.mrb[0].mxu0
    %548 = vdwg.mxu0
    %549 = vmatprep.subr.mxu0 0.0
    %550 = vmatpush1.msra.mxu0 %v207
    %551 = vmatprep.subr.mxu0 0.0
    %552 = vmatpush1.msra.mxu0 %v208
    %553 = vmatprep.subr.mxu0 0.0
    %554 = vmatpush1.msra.mxu0 %v209
    %555 = vmatprep.subr.mxu0 0.0
    %556 = vmatpush1.msra.mxu0 %v210
    %557 = vmatprep.subr.mxu0 0.0
    %558 = vmatpush1.msra.mxu0 %v211
    %559 = vmatprep.subr.mxu0 0.0
    %560 = vmatpush1.msra.mxu0 %v212
    %561 = vmatprep.subr.mxu0 0.0
    %562 = vmatpush1.msra.mxu0 %v213
    %563 = vmatprep.subr.mxu0 0.0
    %564 = vmatpush1.msra.mxu0 %v214
    %565 = vmatprep.subr.mxu0 0.0
    %566 = vmatpush1.msra.mxu0 %v215
    %567 = vmatprep.subr.mxu0 0.0
    %568 = vmatpush1.msra.mxu0 %v216
    %569 = vmatprep.subr.mxu0 0.0
    %570 = vmatpush1.msra.mxu0 %v217
    %571 = vmatprep.subr.mxu0 0.0
    %572 = vmatpush1.msra.mxu0 %v218
    %573 = vmatprep.subr.mxu0 0.0
    %574 = vmatpush1.msra.mxu0 %v219
    %575 = vmatprep.subr.mxu0 0.0
    %576 = vmatpush1.msra.mxu0 %v220
    %577 = vmatprep.subr.mxu0 0.0
    %578 = vmatpush1.msra.mxu0 %v221
    %579 = vmatprep.subr.mxu0 0.0
    %580 = vmatpush1.msra.mxu0 %v222
    %581 = vmatprep.subr.mxu0 0.0
    %582 = vmatpush1.msra.mxu0 %v223
    %583 = vmatprep.subr.mxu0 0.0
    %584 = vmatpush1.msra.mxu0 %v224
    %585 = vmatprep.subr.mxu0 0.0
    %586 = vmatpush1.msra.mxu0 %v225
    %587 = vmatprep.subr.mxu0 0.0
    %588 = vmatpush1.msra.mxu0 %v226
    %589 = vmatprep.subr.mxu0 0.0
    %590 = vmatpush1.msra.mxu0 %v227
    %591 = vmatprep.subr.mxu0 0.0
    %592 = vmatpush1.msra.mxu0 %v228
    %593 = vmatprep.subr.mxu0 0.0
    %594 = vmatpush1.msra.mxu0 %v229
    %595 = vmatprep.subr.mxu0 0.0
    %596 = vmatpush1.msra.mxu0 %v230
    %597 = vmatprep.subr.mxu0 0.0
    %598 = vmatpush1.msra.mxu0 %v231
    %599 = vmatprep.subr.mxu0 0.0
    %600 = vmatpush1.msra.mxu0 %v232
    %601 = vmatprep.subr.mxu0 0.0
    %602 = vmatpush1.msra.mxu0 %v233
    %603 = vmatprep.subr.mxu0 0.0
    %604 = vmatpush1.msra.mxu0 %v234
    %605 = vmatprep.subr.mxu0 0.0
    %606 = vmatpush1.msra.mxu0 %v235
    %607 = vmatprep.subr.mxu0 0.0
    %608 = vmatpush1.msra.mxu0 %v236
    %609 = vmatprep.subr.mxu0 0.0
    %610 = vmatpush1.msra.mxu0 %v237
    %611 = vmatprep.subr.mxu0 0.0
    %612 = vmatpush1.msra.mxu0 %v238
    %613 = vmatprep.mubr.f32.mxu0 %v104
    %614 = vmatmul.mubr.f32.gmra.mrb[0].mxu0 %v103
    %v615 = vpop.f32.mrb[0].mxu0
    %v616 = vadd.f32 0.0, %v615
    %v617 = vpop.f32.mrb[0].mxu0
    %618 = vmatprep.mubr.f32.mxu0 %v106
    %619 = vmatmul.mubr.f32.gmra.mrb[0].mxu0 %v105
    %v620 = vpop.f32.mrb[0].mxu0
    %v621 = vadd.f32 0.0, %v620
    %v622 = vpop.f32.mrb[0].mxu0
    %623 = vmatprep.mubr.f32.mxu0 %v108
    %624 = vmatmul.mubr.f32.gmra.mrb[0].mxu0 %v107
    %v625 = vpop.f32.mrb[0].mxu0
    %v626 = vadd.f32 0.0, %v625
    %v627 = vpop.f32.mrb[0].mxu0
    %628 = vmatprep.mubr.f32.mxu0 %v110
    %629 = vmatmul.mubr.f32.gmra.mrb[0].mxu0 %v109
    %v630 = vpop.f32.mrb[0].mxu0
    %v631 = vadd.f32 0.0, %v630
    %v632 = vpop.f32.mrb[0].mxu0
    %633 = vmatprep.mubr.f32.mxu0 %v112
    %634 = vmatmul.mubr.f32.gmra.mrb[0].mxu0 %v111
    %v635 = vpop.f32.mrb[0].mxu0
    %v636 = vadd.f32 0.0, %v635
    %v637 = vpop.f32.mrb[0].mxu0
    %638 = vmatprep.mubr.f32.mxu0 %v114
    %639 = vmatmul.mubr.f32.gmra.mrb[0].mxu0 %v113
    %v640 = vpop.f32.mrb[0].mxu0
    %v641 = vadd.f32 0.0, %v640
    %v642 = vpop.f32.mrb[0].mxu0
    %643 = vmatprep.mubr.f32.mxu0 %v116
    %644 = vmatmul.mubr.f32.gmra.mrb[0].mxu0 %v115
    %v645 = vpop.f32.mrb[0].mxu0
    %v646 = vadd.f32 0.0, %v645
    %v647 = vpop.f32.mrb[0].mxu0
    %648 = vmatprep.mubr.f32.mxu0 %v118
    %649 = vmatmul.mubr.f32.gmra.mrb[0].mxu0 %v117
    %v650 = vpop.f32.mrb[0].mxu0
    %v651 = vadd.f32 0.0, %v650
    %v652 = vpop.f32.mrb[0].mxu0
    %653 = vmatprep.mubr.f32.mxu0 %v120
    %654 = vmatmul.mubr.f32.gmra.mrb[0].mxu0 %v119
    %v655 = vpop.f32.mrb[0].mxu0
    %v656 = vadd.f32 0.0, %v655
    %v657 = vpop.f32.mrb[0].mxu0
    %658 = vmatprep.mubr.f32.mxu0 %v122
    %659 = vmatmul.mubr.f32.gmra.mrb[0].mxu0 %v121
    %v660 = vpop.f32.mrb[0].mxu0
    %v661 = vadd.f32 0.0, %v660
    %v662 = vpop.f32.mrb[0].mxu0
    %663 = vmatprep.mubr.f32.mxu0 %v124
    %664 = vmatmul.mubr.f32.gmra.mrb[0].mxu0 %v123
    %v665 = vpop.f32.mrb[0].mxu0
    %v666 = vadd.f32 0.0, %v665
    %v667 = vpop.f32.mrb[0].mxu0
    %668 = vmatprep.mubr.f32.mxu0 %v126
    %669 = vmatmul.mubr.f32.gmra.mrb[0].mxu0 %v125
    %v670 = vpop.f32.mrb[0].mxu0
    %v671 = vadd.f32 0.0, %v670
    %v672 = vpop.f32.mrb[0].mxu0
    %673 = vmatprep.mubr.f32.mxu0 %v128
    %674 = vmatmul.mubr.f32.gmra.mrb[0].mxu0 %v127
    %v675 = vpop.f32.mrb[0].mxu0
    %v676 = vadd.f32 0.0, %v675
    %v677 = vpop.f32.mrb[0].mxu0
    %678 = vmatprep.mubr.f32.mxu0 %v130
    %679 = vmatmul.mubr.f32.gmra.mrb[0].mxu0 %v129
    %v680 = vpop.f32.mrb[0].mxu0
    %v681 = vadd.f32 0.0, %v680
    %v682 = vpop.f32.mrb[0].mxu0
    %683 = vmatprep.mubr.f32.mxu0 %v132
    %684 = vmatmul.mubr.f32.gmra.mrb[0].mxu0 %v131
    %v685 = vpop.f32.mrb[0].mxu0
    %v686 = vadd.f32 0.0, %v685
    %v687 = vpop.f32.mrb[0].mxu0
    %688 = vmatprep.mubr.f32.mxu0 %v134
    %689 = vmatmul.mubr.f32.gmra.mrb[0].mxu0 %v133
    %v690 = vpop.f32.mrb[0].mxu0
    %v691 = vadd.f32 0.0, %v690
    %v692 = vpop.f32.mrb[0].mxu0
    %693 = vmatprep.mubr.f32.mxu0 %v136
    %694 = vmatmul.mubr.f32.gmra.mrb[0].mxu0 %v135
    %v695 = vpop.f32.mrb[0].mxu0
    %v696 = vadd.f32 0.0, %v695
    %v697 = vpop.f32.mrb[0].mxu0
    %698 = vmatprep.mubr.f32.mxu0 %v138
    %699 = vmatmul.mubr.f32.gmra.mrb[0].mxu0 %v137
    %v700 = vpop.f32.mrb[0].mxu0
    %v701 = vadd.f32 0.0, %v700
    %v702 = vpop.f32.mrb[0].mxu0
    %703 = vdwg.mxu0
    %704 = vmatprep.subr.mxu0 0.0
    %705 = vmatpush1.msra.mxu0 %v207
    %706 = vmatprep.subr.mxu0 0.0
    %707 = vmatpush1.msra.mxu0 %v208
    %708 = vmatprep.subr.mxu0 0.0
    %709 = vmatpush1.msra.mxu0 %v209
    %710 = vmatprep.subr.mxu0 0.0
    %711 = vmatpush1.msra.mxu0 %v210
    %712 = vmatprep.subr.mxu0 0.0
    %713 = vmatpush1.msra.mxu0 %v211
    %714 = vmatprep.subr.mxu0 0.0
    %715 = vmatpush1.msra.mxu0 %v212
    %716 = vmatprep.subr.mxu0 0.0
    %717 = vmatpush1.msra.mxu0 %v213
    %718 = vmatprep.subr.mxu0 0.0
    %719 = vmatpush1.msra.mxu0 %v214
    %720 = vmatprep.subr.mxu0 0.0
    %721 = vmatpush1.msra.mxu0 %v215
    %722 = vmatprep.subr.mxu0 0.0
    %723 = vmatpush1.msra.mxu0 %v216
    %724 = vmatprep.subr.mxu0 0.0
    %725 = vmatpush1.msra.mxu0 %v217
    %726 = vmatprep.subr.mxu0 0.0
    %727 = vmatpush1.msra.mxu0 %v218
    %728 = vmatprep.subr.mxu0 0.0
    %729 = vmatpush1.msra.mxu0 %v219
    %730 = vmatprep.subr.mxu0 0.0
    %731 = vmatpush1.msra.mxu0 %v220
    %732 = vmatprep.subr.mxu0 0.0
    %733 = vmatpush1.msra.mxu0 %v221
    %734 = vmatprep.subr.mxu0 0.0
    %735 = vmatpush1.msra.mxu0 %v222
    %736 = vmatprep.subr.mxu0 0.0
    %737 = vmatpush1.msra.mxu0 %v223
    %738 = vmatprep.subr.mxu0 0.0
    %739 = vmatpush1.msra.mxu0 %v224
    %740 = vmatprep.subr.mxu0 0.0
    %741 = vmatpush1.msra.mxu0 %v225
    %742 = vmatprep.subr.mxu0 0.0
    %743 = vmatpush1.msra.mxu0 %v226
    %744 = vmatprep.subr.mxu0 0.0
    %745 = vmatpush1.msra.mxu0 %v227
    %746 = vmatprep.subr.mxu0 0.0
    %747 = vmatpush1.msra.mxu0 %v228
    %748 = vmatprep.subr.mxu0 0.0
    %749 = vmatpush1.msra.mxu0 %v229
    %750 = vmatprep.subr.mxu0 0.0
    %751 = vmatpush1.msra.mxu0 %v230
    %752 = vmatprep.subr.mxu0 0.0
    %753 = vmatpush1.msra.mxu0 %v231
    %754 = vmatprep.subr.mxu0 0.0
    %755 = vmatpush1.msra.mxu0 %v232
    %756 = vmatprep.subr.mxu0 0.0
    %757 = vmatpush1.msra.mxu0 %v233
    %758 = vmatprep.subr.mxu0 0.0
    %759 = vmatpush1.msra.mxu0 %v234
    %760 = vmatprep.subr.mxu0 0.0
    %761 = vmatpush1.msra.mxu0 %v235
    %762 = vmatprep.subr.mxu0 0.0
    %763 = vmatpush1.msra.mxu0 %v236
    %764 = vmatprep.subr.mxu0 0.0
    %765 = vmatpush1.msra.mxu0 %v237
    %766 = vmatprep.subr.mxu0 0.0
    %767 = vmatpush1.msra.mxu0 %v238
    %768 = vmatprep.mubr.f32.mxu0 %v140
    %769 = vmatmul.mubr.f32.gmra.mrb[0].mxu0 %v139
    %v770 = vpop.f32.mrb[0].mxu0
    %v771 = vadd.f32 0.0, %v770
    %v772 = vpop.f32.mrb[0].mxu0
    %773 = vmatprep.mubr.f32.mxu0 %v142
    %774 = vmatmul.mubr.f32.gmra.mrb[0].mxu0 %v141
    %v775 = vpop.f32.mrb[0].mxu0
    %v776 = vadd.f32 0.0, %v775
    %v777 = vpop.f32.mrb[0].mxu0
    %778 = vmatprep.mubr.f32.mxu0 %v144
    %779 = vmatmul.mubr.f32.gmra.mrb[0].mxu0 %v143
    %v780 = vpop.f32.mrb[0].mxu0
    %v781 = vadd.f32 0.0, %v780
    %v782 = vpop.f32.mrb[0].mxu0
    %783 = vmatprep.mubr.f32.mxu0 %v146
    %784 = vmatmul.mubr.f32.gmra.mrb[0].mxu0 %v145
    %v785 = vpop.f32.mrb[0].mxu0
    %v786 = vadd.f32 0.0, %v785
    %v787 = vpop.f32.mrb[0].mxu0
    %788 = vmatprep.mubr.f32.mxu0 %v148
    %789 = vmatmul.mubr.f32.gmra.mrb[0].mxu0 %v147
    %v790 = vpop.f32.mrb[0].mxu0
    %v791 = vadd.f32 0.0, %v790
    %v792 = vpop.f32.mrb[0].mxu0
    %793 = vmatprep.mubr.f32.mxu0 %v150
    %794 = vmatmul.mubr.f32.gmra.mrb[0].mxu0 %v149
    %v795 = vpop.f32.mrb[0].mxu0
    %v796 = vadd.f32 0.0, %v795
    %v797 = vpop.f32.mrb[0].mxu0
    %798 = vmatprep.mubr.f32.mxu0 %v152
    %799 = vmatmul.mubr.f32.gmra.mrb[0].mxu0 %v151
    %v800 = vpop.f32.mrb[0].mxu0
    %v801 = vadd.f32 0.0, %v800
    %v802 = vpop.f32.mrb[0].mxu0
    %803 = vmatprep.mubr.f32.mxu0 %v154
    %804 = vmatmul.mubr.f32.gmra.mrb[0].mxu0 %v153
    %v805 = vpop.f32.mrb[0].mxu0
    %v806 = vadd.f32 0.0, %v805
    %v807 = vpop.f32.mrb[0].mxu0
    %808 = vmatprep.mubr.f32.mxu0 %v156
    %809 = vmatmul.mubr.f32.gmra.mrb[0].mxu0 %v155
    %v810 = vpop.f32.mrb[0].mxu0
    %v811 = vadd.f32 0.0, %v810
    %v812 = vpop.f32.mrb[0].mxu0
    %813 = vmatprep.mubr.f32.mxu0 %v158
    %814 = vmatmul.mubr.f32.gmra.mrb[0].mxu0 %v157
    %v815 = vpop.f32.mrb[0].mxu0
    %v816 = vadd.f32 0.0, %v815
    %v817 = vpop.f32.mrb[0].mxu0
    %818 = vmatprep.mubr.f32.mxu0 %v160
    %819 = vmatmul.mubr.f32.gmra.mrb[0].mxu0 %v159
    %v820 = vpop.f32.mrb[0].mxu0
    %v821 = vadd.f32 0.0, %v820
    %v822 = vpop.f32.mrb[0].mxu0
    %823 = vmatprep.mubr.f32.mxu0 %v162
    %824 = vmatmul.mubr.f32.gmra.mrb[0].mxu0 %v161
    %v825 = vpop.f32.mrb[0].mxu0
    %v826 = vadd.f32 0.0, %v825
    %v827 = vpop.f32.mrb[0].mxu0
    %828 = vmatprep.mubr.f32.mxu0 %v164
    %829 = vmatmul.mubr.f32.gmra.mrb[0].mxu0 %v163
    %v830 = vpop.f32.mrb[0].mxu0
    %v831 = vadd.f32 0.0, %v830
    %v832 = vpop.f32.mrb[0].mxu0
    %833 = vmatprep.mubr.f32.mxu0 %v166
    %834 = vmatmul.mubr.f32.gmra.mrb[0].mxu0 %v165
    %v835 = vpop.f32.mrb[0].mxu0
    %v836 = vadd.f32 0.0, %v835
    %v837 = vpop.f32.mrb[0].mxu0
    %838 = vmatprep.mubr.f32.mxu0 %v168
    %839 = vmatmul.mubr.f32.gmra.mrb[0].mxu0 %v167
    %v840 = vpop.f32.mrb[0].mxu0
    %v841 = vadd.f32 0.0, %v840
    %v842 = vpop.f32.mrb[0].mxu0
    %843 = vmatprep.mubr.f32.mxu0 %v170
    %844 = vmatmul.mubr.f32.gmra.mrb[0].mxu0 %v169
    %v845 = vpop.f32.mrb[0].mxu0
    %v846 = vadd.f32 0.0, %v845
    %v847 = vpop.f32.mrb[0].mxu0
    %848 = vmatprep.mubr.f32.mxu0 %v172
    %849 = vmatmul.mubr.f32.gmra.mrb[0].mxu0 %v171
    %v850 = vpop.f32.mrb[0].mxu0
    %v851 = vadd.f32 0.0, %v850
    %v852 = vpop.f32.mrb[0].mxu0
    %853 = vmatprep.mubr.f32.mxu0 %v174
    %854 = vmatmul.mubr.f32.gmra.mrb[0].mxu0 %v173
    %v855 = vpop.f32.mrb[0].mxu0
    %v856 = vadd.f32 0.0, %v855
    %v857 = vpop.f32.mrb[0].mxu0
    %858 = vdwg.mxu0
    %v859 = vand.u32 2147483647, %v306
    %v860 = vand.u32 2147483647, %v461
    %v861 = vmin.f32 %v859, %v860
    %v862 = vmax.f32 %v859, %v860
    %v863 = vrcp.pop %v862
    %v864 = vmul.f32 %v861, %v863
    %v865 = vmul.f32 %v864, %v864
    %v866 = vmul.f32 0.002785687, %v865
    %v867 = vadd.f32 %v866, -0.015866
    %v868 = vmul.f32 %v867, %v865
    %v869 = vadd.f32 %v868, 0.04247222
    %v870 = vmul.f32 %v869, %v865
    %v871 = vadd.f32 %v870, -0.074975304
    %v872 = vmul.f32 %v871, %v865
    %v873 = vadd.f32 %v872, 0.1064488
    %v874 = vmul.f32 %v873, %v865
    %v875 = vadd.f32 %v874, -0.14207031
    %v876 = vmul.f32 %v875, %v865
    %v877 = vadd.f32 %v876, 0.19993454
    %v878 = vmul.f32 %v877, %v865
    %v879 = vadd.f32 %v878, -0.33333147
    %v880 = vmul.f32 %v879, %v865
    %v881 = vmul.f32 %v880, %v864
    %v882 = vadd.f32 %v881, %v864
    %vm883 = vcmp.gt.f32.partialorder %v860, %v859
    %v884 = vsub.f32 1.5707964, %v882
    %v885 = vsel %vm883, %v884, %v882
    %vm886 = vcmp.lt.f32.partialorder %v306, 0.0
    %v887 = vsub.f32 3.1415927, %v885
    %v888 = vsel %vm886, %v887, %v885
    %vm889 = vcmp.lt.s32.totalorder %v306, 0
    %v890 = vsel %vm889, 3.1415927, 0.0
    %vm891 = vcmp.eq.f32.partialorder %v461, 0.0
    %v892 = vsel %vm891, %v890, %v888
    %vm893 = vcmp.ne.f32.partialorder %v306, %v306
    %vm894 = vcmp.ne.f32.partialorder %v461, %v461
    %vm895 = vmor %vm893, %vm894
    %v896 = vsel %vm895, nan, %v892
    %vm897 = vcmp.lt.f32.partialorder %v306, 0.0
    %v898 = vsel %vm897, 2.3561945, 0.7853982
    %vm899 = vcmp.eq.s32.totalorder %v859, inf
    %vm900 = vcmp.eq.s32.totalorder %v860, inf
    %vm901 = vmand %vm899, %vm900
    %v902 = vsel %vm901, %v898, %v896
    %v903 = vand.u32 2147483647, %v902
    %v904 = vand.u32 %v461, 2147483648
    %v905 = vor.u32 %v903, %v904
    %v906 = vand.u32 2147483647, %v311
    %v907 = vand.u32 2147483647, %v466
    %v908 = vmin.f32 %v906, %v907
    %v909 = vmax.f32 %v906, %v907
    %v910 = vrcp.pop %v909
    %v911 = vmul.f32 %v908, %v910
    %v912 = vmul.f32 %v911, %v911
    %v913 = vmul.f32 0.002785687, %v912
    %v914 = vadd.f32 %v913, -0.015866
    %v915 = vmul.f32 %v914, %v912
    %v916 = vadd.f32 %v915, 0.04247222
    %v917 = vmul.f32 %v916, %v912
    %v918 = vadd.f32 %v917, -0.074975304
    %v919 = vmul.f32 %v918, %v912
    %v920 = vadd.f32 %v919, 0.1064488
    %v921 = vmul.f32 %v920, %v912
    %v922 = vadd.f32 %v921, -0.14207031
    %v923 = vmul.f32 %v922, %v912
    %v924 = vadd.f32 %v923, 0.19993454
    %v925 = vmul.f32 %v924, %v912
    %v926 = vadd.f32 %v925, -0.33333147
    %v927 = vmul.f32 %v926, %v912
    %v928 = vmul.f32 %v927, %v911
    %v929 = vadd.f32 %v928, %v911
    %vm930 = vcmp.gt.f32.partialorder %v907, %v906
    %v931 = vsub.f32 1.5707964, %v929
    %v932 = vsel %vm930, %v931, %v929
    %vm933 = vcmp.lt.f32.partialorder %v311, 0.0
    %v934 = vsub.f32 3.1415927, %v932
    %v935 = vsel %vm933, %v934, %v932
    %vm936 = vcmp.lt.s32.totalorder %v311, 0
    %v937 = vsel %vm936, 3.1415927, 0.0
    %vm938 = vcmp.eq.f32.partialorder %v466, 0.0
    %v939 = vsel %vm938, %v937, %v935
    %vm940 = vcmp.ne.f32.partialorder %v311, %v311
    %vm941 = vcmp.ne.f32.partialorder %v466, %v466
    %vm942 = vmor %vm940, %vm941
    %v943 = vsel %vm942, nan, %v939
    %vm944 = vcmp.lt.f32.partialorder %v311, 0.0
    %v945 = vsel %vm944, 2.3561945, 0.7853982
    %vm946 = vcmp.eq.s32.totalorder %v906, inf
    %vm947 = vcmp.eq.s32.totalorder %v907, inf
    %vm948 = vmand %vm946, %vm947
    %v949 = vsel %vm948, %v945, %v943
    %v950 = vand.u32 2147483647, %v949
    %v951 = vand.u32 %v466, 2147483648
    %v952 = vor.u32 %v950, %v951
    %v953 = vand.u32 2147483647, %v316
    %v954 = vand.u32 2147483647, %v471
    %v955 = vmin.f32 %v953, %v954
    %v956 = vmax.f32 %v953, %v954
    %v957 = vrcp.pop %v956
    %v958 = vmul.f32 %v955, %v957
    %v959 = vmul.f32 %v958, %v958
    %v960 = vmul.f32 0.002785687, %v959
    %v961 = vadd.f32 %v960, -0.015866
    %v962 = vmul.f32 %v961, %v959
    %v963 = vadd.f32 %v962, 0.04247222
    %v964 = vmul.f32 %v963, %v959
    %v965 = vadd.f32 %v964, -0.074975304
    %v966 = vmul.f32 %v965, %v959
    %v967 = vadd.f32 %v966, 0.1064488
    %v968 = vmul.f32 %v967, %v959
    %v969 = vadd.f32 %v968, -0.14207031
    %v970 = vmul.f32 %v969, %v959
    %v971 = vadd.f32 %v970, 0.19993454
    %v972 = vmul.f32 %v971, %v959
    %v973 = vadd.f32 %v972, -0.33333147
    %v974 = vmul.f32 %v973, %v959
    %v975 = vmul.f32 %v974, %v958
    %v976 = vadd.f32 %v975, %v958
    %vm977 = vcmp.gt.f32.partialorder %v954, %v953
    %v978 = vsub.f32 1.5707964, %v976
    %v979 = vsel %vm977, %v978, %v976
    %vm980 = vcmp.lt.f32.partialorder %v316, 0.0
    %v981 = vsub.f32 3.1415927, %v979
    %v982 = vsel %vm980, %v981, %v979
    %vm983 = vcmp.lt.s32.totalorder %v316, 0
    %v984 = vsel %vm983, 3.1415927, 0.0
    %vm985 = vcmp.eq.f32.partialorder %v471, 0.0
    %v986 = vsel %vm985, %v984, %v982
    %vm987 = vcmp.ne.f32.partialorder %v316, %v316
    %vm988 = vcmp.ne.f32.partialorder %v471, %v471
    %vm989 = vmor %vm987, %vm988
    %v990 = vsel %vm989, nan, %v986
    %vm991 = vcmp.lt.f32.partialorder %v316, 0.0
    %v992 = vsel %vm991, 2.3561945, 0.7853982
    %vm993 = vcmp.eq.s32.totalorder %v953, inf
    %vm994 = vcmp.eq.s32.totalorder %v954, inf
    %vm995 = vmand %vm993, %vm994
    %v996 = vsel %vm995, %v992, %v990
    %v997 = vand.u32 2147483647, %v996
    %v998 = vand.u32 %v471, 2147483648
    %v999 = vor.u32 %v997, %v998
    %v1000 = vand.u32 2147483647, %v321
    %v1001 = vand.u32 2147483647, %v476
    %v1002 = vmin.f32 %v1000, %v1001
    %v1003 = vmax.f32 %v1000, %v1001
    %v1004 = vrcp.pop %v1003
    %v1005 = vmul.f32 %v1002, %v1004
    %v1006 = vmul.f32 %v1005, %v1005
    %v1007 = vmul.f32 0.002785687, %v1006
    %v1008 = vadd.f32 %v1007, -0.015866
    %v1009 = vmul.f32 %v1008, %v1006
    %v1010 = vadd.f32 %v1009, 0.04247222
    %v1011 = vmul.f32 %v1010, %v1006
    %v1012 = vadd.f32 %v1011, -0.074975304
    %v1013 = vmul.f32 %v1012, %v1006
    %v1014 = vadd.f32 %v1013, 0.1064488
    %v1015 = vmul.f32 %v1014, %v1006
    %v1016 = vadd.f32 %v1015, -0.14207031
    %v1017 = vmul.f32 %v1016, %v1006
    %v1018 = vadd.f32 %v1017, 0.19993454
    %v1019 = vmul.f32 %v1018, %v1006
    %v1020 = vadd.f32 %v1019, -0.33333147
    %v1021 = vmul.f32 %v1020, %v1006
    %v1022 = vmul.f32 %v1021, %v1005
    %v1023 = vadd.f32 %v1022, %v1005
    %vm1024 = vcmp.gt.f32.partialorder %v1001, %v1000
    %v1025 = vsub.f32 1.5707964, %v1023
    %v1026 = vsel %vm1024, %v1025, %v1023
    %vm1027 = vcmp.lt.f32.partialorder %v321, 0.0
    %v1028 = vsub.f32 3.1415927, %v1026
    %v1029 = vsel %vm1027, %v1028, %v1026
    %vm1030 = vcmp.lt.s32.totalorder %v321, 0
    %v1031 = vsel %vm1030, 3.1415927, 0.0
    %vm1032 = vcmp.eq.f32.partialorder %v476, 0.0
    %v1033 = vsel %vm1032, %v1031, %v1029
    %vm1034 = vcmp.ne.f32.partialorder %v321, %v321
    %vm1035 = vcmp.ne.f32.partialorder %v476, %v476
    %vm1036 = vmor %vm1034, %vm1035
    %v1037 = vsel %vm1036, nan, %v1033
    %vm1038 = vcmp.lt.f32.partialorder %v321, 0.0
    %v1039 = vsel %vm1038, 2.3561945, 0.7853982
    %vm1040 = vcmp.eq.s32.totalorder %v1000, inf
    %vm1041 = vcmp.eq.s32.totalorder %v1001, inf
    %vm1042 = vmand %vm1040, %vm1041
    %v1043 = vsel %vm1042, %v1039, %v1037
    %v1044 = vand.u32 2147483647, %v1043
    %v1045 = vand.u32 %v476, 2147483648
    %v1046 = vor.u32 %v1044, %v1045
    %v1047 = vand.u32 2147483647, %v326
    %v1048 = vand.u32 2147483647, %v481
    %v1049 = vmin.f32 %v1047, %v1048
    %v1050 = vmax.f32 %v1047, %v1048
    %v1051 = vrcp.pop %v1050
    %v1052 = vmul.f32 %v1049, %v1051
    %v1053 = vmul.f32 %v1052, %v1052
    %v1054 = vmul.f32 0.002785687, %v1053
    %v1055 = vadd.f32 %v1054, -0.015866
    %v1056 = vmul.f32 %v1055, %v1053
    %v1057 = vadd.f32 %v1056, 0.04247222
    %v1058 = vmul.f32 %v1057, %v1053
    %v1059 = vadd.f32 %v1058, -0.074975304
    %v1060 = vmul.f32 %v1059, %v1053
    %v1061 = vadd.f32 %v1060, 0.1064488
    %v1062 = vmul.f32 %v1061, %v1053
    %v1063 = vadd.f32 %v1062, -0.14207031
    %v1064 = vmul.f32 %v1063, %v1053
    %v1065 = vadd.f32 %v1064, 0.19993454
    %v1066 = vmul.f32 %v1065, %v1053
    %v1067 = vadd.f32 %v1066, -0.33333147
    %v1068 = vmul.f32 %v1067, %v1053
    %v1069 = vmul.f32 %v1068, %v1052
    %v1070 = vadd.f32 %v1069, %v1052
    %vm1071 = vcmp.gt.f32.partialorder %v1048, %v1047
    %v1072 = vsub.f32 1.5707964, %v1070
    %v1073 = vsel %vm1071, %v1072, %v1070
    %vm1074 = vcmp.lt.f32.partialorder %v326, 0.0
    %v1075 = vsub.f32 3.1415927, %v1073
    %v1076 = vsel %vm1074, %v1075, %v1073
    %vm1077 = vcmp.lt.s32.totalorder %v326, 0
    %v1078 = vsel %vm1077, 3.1415927, 0.0
    %vm1079 = vcmp.eq.f32.partialorder %v481, 0.0
    %v1080 = vsel %vm1079, %v1078, %v1076
    %vm1081 = vcmp.ne.f32.partialorder %v326, %v326
    %vm1082 = vcmp.ne.f32.partialorder %v481, %v481
    %vm1083 = vmor %vm1081, %vm1082
    %v1084 = vsel %vm1083, nan, %v1080
    %vm1085 = vcmp.lt.f32.partialorder %v326, 0.0
    %v1086 = vsel %vm1085, 2.3561945, 0.7853982
    %vm1087 = vcmp.eq.s32.totalorder %v1047, inf
    %vm1088 = vcmp.eq.s32.totalorder %v1048, inf
    %vm1089 = vmand %vm1087, %vm1088
    %v1090 = vsel %vm1089, %v1086, %v1084
    %v1091 = vand.u32 2147483647, %v1090
    %v1092 = vand.u32 %v481, 2147483648
    %v1093 = vor.u32 %v1091, %v1092
    %v1094 = vand.u32 2147483647, %v331
    %v1095 = vand.u32 2147483647, %v486
    %v1096 = vmin.f32 %v1094, %v1095
    %v1097 = vmax.f32 %v1094, %v1095
    %v1098 = vrcp.pop %v1097
    %v1099 = vmul.f32 %v1096, %v1098
    %v1100 = vmul.f32 %v1099, %v1099
    %v1101 = vmul.f32 0.002785687, %v1100
    %v1102 = vadd.f32 %v1101, -0.015866
    %v1103 = vmul.f32 %v1102, %v1100
    %v1104 = vadd.f32 %v1103, 0.04247222
    %v1105 = vmul.f32 %v1104, %v1100
    %v1106 = vadd.f32 %v1105, -0.074975304
    %v1107 = vmul.f32 %v1106, %v1100
    %v1108 = vadd.f32 %v1107, 0.1064488
    %v1109 = vmul.f32 %v1108, %v1100
    %v1110 = vadd.f32 %v1109, -0.14207031
    %v1111 = vmul.f32 %v1110, %v1100
    %v1112 = vadd.f32 %v1111, 0.19993454
    %v1113 = vmul.f32 %v1112, %v1100
    %v1114 = vadd.f32 %v1113, -0.33333147
    %v1115 = vmul.f32 %v1114, %v1100
    %v1116 = vmul.f32 %v1115, %v1099
    %v1117 = vadd.f32 %v1116, %v1099
    %vm1118 = vcmp.gt.f32.partialorder %v1095, %v1094
    %v1119 = vsub.f32 1.5707964, %v1117
    %v1120 = vsel %vm1118, %v1119, %v1117
    %vm1121 = vcmp.lt.f32.partialorder %v331, 0.0
    %v1122 = vsub.f32 3.1415927, %v1120
    %v1123 = vsel %vm1121, %v1122, %v1120
    %vm1124 = vcmp.lt.s32.totalorder %v331, 0
    %v1125 = vsel %vm1124, 3.1415927, 0.0
    %vm1126 = vcmp.eq.f32.partialorder %v486, 0.0
    %v1127 = vsel %vm1126, %v1125, %v1123
    %vm1128 = vcmp.ne.f32.partialorder %v331, %v331
    %vm1129 = vcmp.ne.f32.partialorder %v486, %v486
    %vm1130 = vmor %vm1128, %vm1129
    %v1131 = vsel %vm1130, nan, %v1127
    %vm1132 = vcmp.lt.f32.partialorder %v331, 0.0
    %v1133 = vsel %vm1132, 2.3561945, 0.7853982
    %vm1134 = vcmp.eq.s32.totalorder %v1094, inf
    %vm1135 = vcmp.eq.s32.totalorder %v1095, inf
    %vm1136 = vmand %vm1134, %vm1135
    %v1137 = vsel %vm1136, %v1133, %v1131
    %v1138 = vand.u32 2147483647, %v1137
    %v1139 = vand.u32 %v486, 2147483648
    %v1140 = vor.u32 %v1138, %v1139
    %v1141 = vand.u32 2147483647, %v336
    %v1142 = vand.u32 2147483647, %v491
    %v1143 = vmin.f32 %v1141, %v1142
    %v1144 = vmax.f32 %v1141, %v1142
    %v1145 = vrcp.pop %v1144
    %v1146 = vmul.f32 %v1143, %v1145
    %v1147 = vmul.f32 %v1146, %v1146
    %v1148 = vmul.f32 0.002785687, %v1147
    %v1149 = vadd.f32 %v1148, -0.015866
    %v1150 = vmul.f32 %v1149, %v1147
    %v1151 = vadd.f32 %v1150, 0.04247222
    %v1152 = vmul.f32 %v1151, %v1147
    %v1153 = vadd.f32 %v1152, -0.074975304
    %v1154 = vmul.f32 %v1153, %v1147
    %v1155 = vadd.f32 %v1154, 0.1064488
    %v1156 = vmul.f32 %v1155, %v1147
    %v1157 = vadd.f32 %v1156, -0.14207031
    %v1158 = vmul.f32 %v1157, %v1147
    %v1159 = vadd.f32 %v1158, 0.19993454
    %v1160 = vmul.f32 %v1159, %v1147
    %v1161 = vadd.f32 %v1160, -0.33333147
    %v1162 = vmul.f32 %v1161, %v1147
    %v1163 = vmul.f32 %v1162, %v1146
    %v1164 = vadd.f32 %v1163, %v1146
    %vm1165 = vcmp.gt.f32.partialorder %v1142, %v1141
    %v1166 = vsub.f32 1.5707964, %v1164
    %v1167 = vsel %vm1165, %v1166, %v1164
    %vm1168 = vcmp.lt.f32.partialorder %v336, 0.0
    %v1169 = vsub.f32 3.1415927, %v1167
    %v1170 = vsel %vm1168, %v1169, %v1167
    %vm1171 = vcmp.lt.s32.totalorder %v336, 0
    %v1172 = vsel %vm1171, 3.1415927, 0.0
    %vm1173 = vcmp.eq.f32.partialorder %v491, 0.0
    %v1174 = vsel %vm1173, %v1172, %v1170
    %vm1175 = vcmp.ne.f32.partialorder %v336, %v336
    %vm1176 = vcmp.ne.f32.partialorder %v491, %v491
    %vm1177 = vmor %vm1175, %vm1176
    %v1178 = vsel %vm1177, nan, %v1174
    %vm1179 = vcmp.lt.f32.partialorder %v336, 0.0
    %v1180 = vsel %vm1179, 2.3561945, 0.7853982
    %vm1181 = vcmp.eq.s32.totalorder %v1141, inf
    %vm1182 = vcmp.eq.s32.totalorder %v1142, inf
    %vm1183 = vmand %vm1181, %vm1182
    %v1184 = vsel %vm1183, %v1180, %v1178
    %v1185 = vand.u32 2147483647, %v1184
    %v1186 = vand.u32 %v491, 2147483648
    %v1187 = vor.u32 %v1185, %v1186
    %v1188 = vand.u32 2147483647, %v341
    %v1189 = vand.u32 2147483647, %v496
    %v1190 = vmin.f32 %v1188, %v1189
    %v1191 = vmax.f32 %v1188, %v1189
    %v1192 = vrcp.pop %v1191
    %v1193 = vmul.f32 %v1190, %v1192
    %v1194 = vmul.f32 %v1193, %v1193
    %v1195 = vmul.f32 0.002785687, %v1194
    %v1196 = vadd.f32 %v1195, -0.015866
    %v1197 = vmul.f32 %v1196, %v1194
    %v1198 = vadd.f32 %v1197, 0.04247222
    %v1199 = vmul.f32 %v1198, %v1194
    %v1200 = vadd.f32 %v1199, -0.074975304
    %v1201 = vmul.f32 %v1200, %v1194
    %v1202 = vadd.f32 %v1201, 0.1064488
    %v1203 = vmul.f32 %v1202, %v1194
    %v1204 = vadd.f32 %v1203, -0.14207031
    %v1205 = vmul.f32 %v1204, %v1194
    %v1206 = vadd.f32 %v1205, 0.19993454
    %v1207 = vmul.f32 %v1206, %v1194
    %v1208 = vadd.f32 %v1207, -0.33333147
    %v1209 = vmul.f32 %v1208, %v1194
    %v1210 = vmul.f32 %v1209, %v1193
    %v1211 = vadd.f32 %v1210, %v1193
    %vm1212 = vcmp.gt.f32.partialorder %v1189, %v1188
    %v1213 = vsub.f32 1.5707964, %v1211
    %v1214 = vsel %vm1212, %v1213, %v1211
    %vm1215 = vcmp.lt.f32.partialorder %v341, 0.0
    %v1216 = vsub.f32 3.1415927, %v1214
    %v1217 = vsel %vm1215, %v1216, %v1214
    %vm1218 = vcmp.lt.s32.totalorder %v341, 0
    %v1219 = vsel %vm1218, 3.1415927, 0.0
    %vm1220 = vcmp.eq.f32.partialorder %v496, 0.0
    %v1221 = vsel %vm1220, %v1219, %v1217
    %vm1222 = vcmp.ne.f32.partialorder %v341, %v341
    %vm1223 = vcmp.ne.f32.partialorder %v496, %v496
    %vm1224 = vmor %vm1222, %vm1223
    %v1225 = vsel %vm1224, nan, %v1221
    %vm1226 = vcmp.lt.f32.partialorder %v341, 0.0
    %v1227 = vsel %vm1226, 2.3561945, 0.7853982
    %vm1228 = vcmp.eq.s32.totalorder %v1188, inf
    %vm1229 = vcmp.eq.s32.totalorder %v1189, inf
    %vm1230 = vmand %vm1228, %vm1229
    %v1231 = vsel %vm1230, %v1227, %v1225
    %v1232 = vand.u32 2147483647, %v1231
    %v1233 = vand.u32 %v496, 2147483648
    %v1234 = vor.u32 %v1232, %v1233
    %v1235 = vand.u32 2147483647, %v346
    %v1236 = vand.u32 2147483647, %v501
    %v1237 = vmin.f32 %v1235, %v1236
    %v1238 = vmax.f32 %v1235, %v1236
    %v1239 = vrcp.pop %v1238
    %v1240 = vmul.f32 %v1237, %v1239
    %v1241 = vmul.f32 %v1240, %v1240
    %v1242 = vmul.f32 0.002785687, %v1241
    %v1243 = vadd.f32 %v1242, -0.015866
    %v1244 = vmul.f32 %v1243, %v1241
    %v1245 = vadd.f32 %v1244, 0.04247222
    %v1246 = vmul.f32 %v1245, %v1241
    %v1247 = vadd.f32 %v1246, -0.074975304
    %v1248 = vmul.f32 %v1247, %v1241
    %v1249 = vadd.f32 %v1248, 0.1064488
    %v1250 = vmul.f32 %v1249, %v1241
    %v1251 = vadd.f32 %v1250, -0.14207031
    %v1252 = vmul.f32 %v1251, %v1241
    %v1253 = vadd.f32 %v1252, 0.19993454
    %v1254 = vmul.f32 %v1253, %v1241
    %v1255 = vadd.f32 %v1254, -0.33333147
    %v1256 = vmul.f32 %v1255, %v1241
    %v1257 = vmul.f32 %v1256, %v1240
    %v1258 = vadd.f32 %v1257, %v1240
    %vm1259 = vcmp.gt.f32.partialorder %v1236, %v1235
    %v1260 = vsub.f32 1.5707964, %v1258
    %v1261 = vsel %vm1259, %v1260, %v1258
    %vm1262 = vcmp.lt.f32.partialorder %v346, 0.0
    %v1263 = vsub.f32 3.1415927, %v1261
    %v1264 = vsel %vm1262, %v1263, %v1261
    %vm1265 = vcmp.lt.s32.totalorder %v346, 0
    %v1266 = vsel %vm1265, 3.1415927, 0.0
    %vm1267 = vcmp.eq.f32.partialorder %v501, 0.0
    %v1268 = vsel %vm1267, %v1266, %v1264
    %vm1269 = vcmp.ne.f32.partialorder %v346, %v346
    %vm1270 = vcmp.ne.f32.partialorder %v501, %v501
    %vm1271 = vmor %vm1269, %vm1270
    %v1272 = vsel %vm1271, nan, %v1268
    %vm1273 = vcmp.lt.f32.partialorder %v346, 0.0
    %v1274 = vsel %vm1273, 2.3561945, 0.7853982
    %vm1275 = vcmp.eq.s32.totalorder %v1235, inf
    %vm1276 = vcmp.eq.s32.totalorder %v1236, inf
    %vm1277 = vmand %vm1275, %vm1276
    %v1278 = vsel %vm1277, %v1274, %v1272
    %v1279 = vand.u32 2147483647, %v1278
    %v1280 = vand.u32 %v501, 2147483648
    %v1281 = vor.u32 %v1279, %v1280
    %v1282 = vand.u32 2147483647, %v351
    %v1283 = vand.u32 2147483647, %v506
    %v1284 = vmin.f32 %v1282, %v1283
    %v1285 = vmax.f32 %v1282, %v1283
    %v1286 = vrcp.pop %v1285
    %v1287 = vmul.f32 %v1284, %v1286
    %v1288 = vmul.f32 %v1287, %v1287
    %v1289 = vmul.f32 0.002785687, %v1288
    %v1290 = vadd.f32 %v1289, -0.015866
    %v1291 = vmul.f32 %v1290, %v1288
    %v1292 = vadd.f32 %v1291, 0.04247222
    %v1293 = vmul.f32 %v1292, %v1288
    %v1294 = vadd.f32 %v1293, -0.074975304
    %v1295 = vmul.f32 %v1294, %v1288
    %v1296 = vadd.f32 %v1295, 0.1064488
    %v1297 = vmul.f32 %v1296, %v1288
    %v1298 = vadd.f32 %v1297, -0.14207031
    %v1299 = vmul.f32 %v1298, %v1288
    %v1300 = vadd.f32 %v1299, 0.19993454
    %v1301 = vmul.f32 %v1300, %v1288
    %v1302 = vadd.f32 %v1301, -0.33333147
    %v1303 = vmul.f32 %v1302, %v1288
    %v1304 = vmul.f32 %v1303, %v1287
    %v1305 = vadd.f32 %v1304, %v1287
    %vm1306 = vcmp.gt.f32.partialorder %v1283, %v1282
    %v1307 = vsub.f32 1.5707964, %v1305
    %v1308 = vsel %vm1306, %v1307, %v1305
    %vm1309 = vcmp.lt.f32.partialorder %v351, 0.0
    %v1310 = vsub.f32 3.1415927, %v1308
    %v1311 = vsel %vm1309, %v1310, %v1308
    %vm1312 = vcmp.lt.s32.totalorder %v351, 0
    %v1313 = vsel %vm1312, 3.1415927, 0.0
    %vm1314 = vcmp.eq.f32.partialorder %v506, 0.0
    %v1315 = vsel %vm1314, %v1313, %v1311
    %vm1316 = vcmp.ne.f32.partialorder %v351, %v351
    %vm1317 = vcmp.ne.f32.partialorder %v506, %v506
    %vm1318 = vmor %vm1316, %vm1317
    %v1319 = vsel %vm1318, nan, %v1315
    %vm1320 = vcmp.lt.f32.partialorder %v351, 0.0
    %v1321 = vsel %vm1320, 2.3561945, 0.7853982
    %vm1322 = vcmp.eq.s32.totalorder %v1282, inf
    %vm1323 = vcmp.eq.s32.totalorder %v1283, inf
    %vm1324 = vmand %vm1322, %vm1323
    %v1325 = vsel %vm1324, %v1321, %v1319
    %v1326 = vand.u32 2147483647, %v1325
    %v1327 = vand.u32 %v506, 2147483648
    %v1328 = vor.u32 %v1326, %v1327
    %v1329 = vand.u32 2147483647, %v356
    %v1330 = vand.u32 2147483647, %v511
    %v1331 = vmin.f32 %v1329, %v1330
    %v1332 = vmax.f32 %v1329, %v1330
    %v1333 = vrcp.pop %v1332
    %v1334 = vmul.f32 %v1331, %v1333
    %v1335 = vmul.f32 %v1334, %v1334
    %v1336 = vmul.f32 0.002785687, %v1335
    %v1337 = vadd.f32 %v1336, -0.015866
    %v1338 = vmul.f32 %v1337, %v1335
    %v1339 = vadd.f32 %v1338, 0.04247222
    %v1340 = vmul.f32 %v1339, %v1335
    %v1341 = vadd.f32 %v1340, -0.074975304
    %v1342 = vmul.f32 %v1341, %v1335
    %v1343 = vadd.f32 %v1342, 0.1064488
    %v1344 = vmul.f32 %v1343, %v1335
    %v1345 = vadd.f32 %v1344, -0.14207031
    %v1346 = vmul.f32 %v1345, %v1335
    %v1347 = vadd.f32 %v1346, 0.19993454
    %v1348 = vmul.f32 %v1347, %v1335
    %v1349 = vadd.f32 %v1348, -0.33333147
    %v1350 = vmul.f32 %v1349, %v1335
    %v1351 = vmul.f32 %v1350, %v1334
    %v1352 = vadd.f32 %v1351, %v1334
    %vm1353 = vcmp.gt.f32.partialorder %v1330, %v1329
    %v1354 = vsub.f32 1.5707964, %v1352
    %v1355 = vsel %vm1353, %v1354, %v1352
    %vm1356 = vcmp.lt.f32.partialorder %v356, 0.0
    %v1357 = vsub.f32 3.1415927, %v1355
    %v1358 = vsel %vm1356, %v1357, %v1355
    %vm1359 = vcmp.lt.s32.totalorder %v356, 0
    %v1360 = vsel %vm1359, 3.1415927, 0.0
    %vm1361 = vcmp.eq.f32.partialorder %v511, 0.0
    %v1362 = vsel %vm1361, %v1360, %v1358
    %vm1363 = vcmp.ne.f32.partialorder %v356, %v356
    %vm1364 = vcmp.ne.f32.partialorder %v511, %v511
    %vm1365 = vmor %vm1363, %vm1364
    %v1366 = vsel %vm1365, nan, %v1362
    %vm1367 = vcmp.lt.f32.partialorder %v356, 0.0
    %v1368 = vsel %vm1367, 2.3561945, 0.7853982
    %vm1369 = vcmp.eq.s32.totalorder %v1329, inf
    %vm1370 = vcmp.eq.s32.totalorder %v1330, inf
    %vm1371 = vmand %vm1369, %vm1370
    %v1372 = vsel %vm1371, %v1368, %v1366
    %v1373 = vand.u32 2147483647, %v1372
    %v1374 = vand.u32 %v511, 2147483648
    %v1375 = vor.u32 %v1373, %v1374
    %v1376 = vand.u32 2147483647, %v361
    %v1377 = vand.u32 2147483647, %v516
    %v1378 = vmin.f32 %v1376, %v1377
    %v1379 = vmax.f32 %v1376, %v1377
    %v1380 = vrcp.pop %v1379
    %v1381 = vmul.f32 %v1378, %v1380
    %v1382 = vmul.f32 %v1381, %v1381
    %v1383 = vmul.f32 0.002785687, %v1382
    %v1384 = vadd.f32 %v1383, -0.015866
    %v1385 = vmul.f32 %v1384, %v1382
    %v1386 = vadd.f32 %v1385, 0.04247222
    %v1387 = vmul.f32 %v1386, %v1382
    %v1388 = vadd.f32 %v1387, -0.074975304
    %v1389 = vmul.f32 %v1388, %v1382
    %v1390 = vadd.f32 %v1389, 0.1064488
    %v1391 = vmul.f32 %v1390, %v1382
    %v1392 = vadd.f32 %v1391, -0.14207031
    %v1393 = vmul.f32 %v1392, %v1382
    %v1394 = vadd.f32 %v1393, 0.19993454
    %v1395 = vmul.f32 %v1394, %v1382
    %v1396 = vadd.f32 %v1395, -0.33333147
    %v1397 = vmul.f32 %v1396, %v1382
    %v1398 = vmul.f32 %v1397, %v1381
    %v1399 = vadd.f32 %v1398, %v1381
    %vm1400 = vcmp.gt.f32.partialorder %v1377, %v1376
    %v1401 = vsub.f32 1.5707964, %v1399
    %v1402 = vsel %vm1400, %v1401, %v1399
    %vm1403 = vcmp.lt.f32.partialorder %v361, 0.0
    %v1404 = vsub.f32 3.1415927, %v1402
    %v1405 = vsel %vm1403, %v1404, %v1402
    %vm1406 = vcmp.lt.s32.totalorder %v361, 0
    %v1407 = vsel %vm1406, 3.1415927, 0.0
    %vm1408 = vcmp.eq.f32.partialorder %v516, 0.0
    %v1409 = vsel %vm1408, %v1407, %v1405
    %vm1410 = vcmp.ne.f32.partialorder %v361, %v361
    %vm1411 = vcmp.ne.f32.partialorder %v516, %v516
    %vm1412 = vmor %vm1410, %vm1411
    %v1413 = vsel %vm1412, nan, %v1409
    %vm1414 = vcmp.lt.f32.partialorder %v361, 0.0
    %v1415 = vsel %vm1414, 2.3561945, 0.7853982
    %vm1416 = vcmp.eq.s32.totalorder %v1376, inf
    %vm1417 = vcmp.eq.s32.totalorder %v1377, inf
    %vm1418 = vmand %vm1416, %vm1417
    %v1419 = vsel %vm1418, %v1415, %v1413
    %v1420 = vand.u32 2147483647, %v1419
    %v1421 = vand.u32 %v516, 2147483648
    %v1422 = vor.u32 %v1420, %v1421
    %v1423 = vand.u32 2147483647, %v366
    %v1424 = vand.u32 2147483647, %v521
    %v1425 = vmin.f32 %v1423, %v1424
    %v1426 = vmax.f32 %v1423, %v1424
    %v1427 = vrcp.pop %v1426
    %v1428 = vmul.f32 %v1425, %v1427
    %v1429 = vmul.f32 %v1428, %v1428
    %v1430 = vmul.f32 0.002785687, %v1429
    %v1431 = vadd.f32 %v1430, -0.015866
    %v1432 = vmul.f32 %v1431, %v1429
    %v1433 = vadd.f32 %v1432, 0.04247222
    %v1434 = vmul.f32 %v1433, %v1429
    %v1435 = vadd.f32 %v1434, -0.074975304
    %v1436 = vmul.f32 %v1435, %v1429
    %v1437 = vadd.f32 %v1436, 0.1064488
    %v1438 = vmul.f32 %v1437, %v1429
    %v1439 = vadd.f32 %v1438, -0.14207031
    %v1440 = vmul.f32 %v1439, %v1429
    %v1441 = vadd.f32 %v1440, 0.19993454
    %v1442 = vmul.f32 %v1441, %v1429
    %v1443 = vadd.f32 %v1442, -0.33333147
    %v1444 = vmul.f32 %v1443, %v1429
    %v1445 = vmul.f32 %v1444, %v1428
    %v1446 = vadd.f32 %v1445, %v1428
    %vm1447 = vcmp.gt.f32.partialorder %v1424, %v1423
    %v1448 = vsub.f32 1.5707964, %v1446
    %v1449 = vsel %vm1447, %v1448, %v1446
    %vm1450 = vcmp.lt.f32.partialorder %v366, 0.0
    %v1451 = vsub.f32 3.1415927, %v1449
    %v1452 = vsel %vm1450, %v1451, %v1449
    %vm1453 = vcmp.lt.s32.totalorder %v366, 0
    %v1454 = vsel %vm1453, 3.1415927, 0.0
    %vm1455 = vcmp.eq.f32.partialorder %v521, 0.0
    %v1456 = vsel %vm1455, %v1454, %v1452
    %vm1457 = vcmp.ne.f32.partialorder %v366, %v366
    %vm1458 = vcmp.ne.f32.partialorder %v521, %v521
    %vm1459 = vmor %vm1457, %vm1458
    %v1460 = vsel %vm1459, nan, %v1456
    %vm1461 = vcmp.lt.f32.partialorder %v366, 0.0
    %v1462 = vsel %vm1461, 2.3561945, 0.7853982
    %vm1463 = vcmp.eq.s32.totalorder %v1423, inf
    %vm1464 = vcmp.eq.s32.totalorder %v1424, inf
    %vm1465 = vmand %vm1463, %vm1464
    %v1466 = vsel %vm1465, %v1462, %v1460
    %v1467 = vand.u32 2147483647, %v1466
    %v1468 = vand.u32 %v521, 2147483648
    %v1469 = vor.u32 %v1467, %v1468
    %v1470 = vand.u32 2147483647, %v371
    %v1471 = vand.u32 2147483647, %v526
    %v1472 = vmin.f32 %v1470, %v1471
    %v1473 = vmax.f32 %v1470, %v1471
    %v1474 = vrcp.pop %v1473
    %v1475 = vmul.f32 %v1472, %v1474
    %v1476 = vmul.f32 %v1475, %v1475
    %v1477 = vmul.f32 0.002785687, %v1476
    %v1478 = vadd.f32 %v1477, -0.015866
    %v1479 = vmul.f32 %v1478, %v1476
    %v1480 = vadd.f32 %v1479, 0.04247222
    %v1481 = vmul.f32 %v1480, %v1476
    %v1482 = vadd.f32 %v1481, -0.074975304
    %v1483 = vmul.f32 %v1482, %v1476
    %v1484 = vadd.f32 %v1483, 0.1064488
    %v1485 = vmul.f32 %v1484, %v1476
    %v1486 = vadd.f32 %v1485, -0.14207031
    %v1487 = vmul.f32 %v1486, %v1476
    %v1488 = vadd.f32 %v1487, 0.19993454
    %v1489 = vmul.f32 %v1488, %v1476
    %v1490 = vadd.f32 %v1489, -0.33333147
    %v1491 = vmul.f32 %v1490, %v1476
    %v1492 = vmul.f32 %v1491, %v1475
    %v1493 = vadd.f32 %v1492, %v1475
    %vm1494 = vcmp.gt.f32.partialorder %v1471, %v1470
    %v1495 = vsub.f32 1.5707964, %v1493
    %v1496 = vsel %vm1494, %v1495, %v1493
    %vm1497 = vcmp.lt.f32.partialorder %v371, 0.0
    %v1498 = vsub.f32 3.1415927, %v1496
    %v1499 = vsel %vm1497, %v1498, %v1496
    %vm1500 = vcmp.lt.s32.totalorder %v371, 0
    %v1501 = vsel %vm1500, 3.1415927, 0.0
    %vm1502 = vcmp.eq.f32.partialorder %v526, 0.0
    %v1503 = vsel %vm1502, %v1501, %v1499
    %vm1504 = vcmp.ne.f32.partialorder %v371, %v371
    %vm1505 = vcmp.ne.f32.partialorder %v526, %v526
    %vm1506 = vmor %vm1504, %vm1505
    %v1507 = vsel %vm1506, nan, %v1503
    %vm1508 = vcmp.lt.f32.partialorder %v371, 0.0
    %v1509 = vsel %vm1508, 2.3561945, 0.7853982
    %vm1510 = vcmp.eq.s32.totalorder %v1470, inf
    %vm1511 = vcmp.eq.s32.totalorder %v1471, inf
    %vm1512 = vmand %vm1510, %vm1511
    %v1513 = vsel %vm1512, %v1509, %v1507
    %v1514 = vand.u32 2147483647, %v1513
    %v1515 = vand.u32 %v526, 2147483648
    %v1516 = vor.u32 %v1514, %v1515
    %v1517 = vand.u32 2147483647, %v376
    %v1518 = vand.u32 2147483647, %v531
    %v1519 = vmin.f32 %v1517, %v1518
    %v1520 = vmax.f32 %v1517, %v1518
    %v1521 = vrcp.pop %v1520
    %v1522 = vmul.f32 %v1519, %v1521
    %v1523 = vmul.f32 %v1522, %v1522
    %v1524 = vmul.f32 0.002785687, %v1523
    %v1525 = vadd.f32 %v1524, -0.015866
    %v1526 = vmul.f32 %v1525, %v1523
    %v1527 = vadd.f32 %v1526, 0.04247222
    %v1528 = vmul.f32 %v1527, %v1523
    %v1529 = vadd.f32 %v1528, -0.074975304
    %v1530 = vmul.f32 %v1529, %v1523
    %v1531 = vadd.f32 %v1530, 0.1064488
    %v1532 = vmul.f32 %v1531, %v1523
    %v1533 = vadd.f32 %v1532, -0.14207031
    %v1534 = vmul.f32 %v1533, %v1523
    %v1535 = vadd.f32 %v1534, 0.19993454
    %v1536 = vmul.f32 %v1535, %v1523
    %v1537 = vadd.f32 %v1536, -0.33333147
    %v1538 = vmul.f32 %v1537, %v1523
    %v1539 = vmul.f32 %v1538, %v1522
    %v1540 = vadd.f32 %v1539, %v1522
    %vm1541 = vcmp.gt.f32.partialorder %v1518, %v1517
    %v1542 = vsub.f32 1.5707964, %v1540
    %v1543 = vsel %vm1541, %v1542, %v1540
    %vm1544 = vcmp.lt.f32.partialorder %v376, 0.0
    %v1545 = vsub.f32 3.1415927, %v1543
    %v1546 = vsel %vm1544, %v1545, %v1543
    %vm1547 = vcmp.lt.s32.totalorder %v376, 0
    %v1548 = vsel %vm1547, 3.1415927, 0.0
    %vm1549 = vcmp.eq.f32.partialorder %v531, 0.0
    %v1550 = vsel %vm1549, %v1548, %v1546
    %vm1551 = vcmp.ne.f32.partialorder %v376, %v376
    %vm1552 = vcmp.ne.f32.partialorder %v531, %v531
    %vm1553 = vmor %vm1551, %vm1552
    %v1554 = vsel %vm1553, nan, %v1550
    %vm1555 = vcmp.lt.f32.partialorder %v376, 0.0
    %v1556 = vsel %vm1555, 2.3561945, 0.7853982
    %vm1557 = vcmp.eq.s32.totalorder %v1517, inf
    %vm1558 = vcmp.eq.s32.totalorder %v1518, inf
    %vm1559 = vmand %vm1557, %vm1558
    %v1560 = vsel %vm1559, %v1556, %v1554
    %v1561 = vand.u32 2147483647, %v1560
    %v1562 = vand.u32 %v531, 2147483648
    %v1563 = vor.u32 %v1561, %v1562
    %v1564 = vand.u32 2147483647, %v381
    %v1565 = vand.u32 2147483647, %v536
    %v1566 = vmin.f32 %v1564, %v1565
    %v1567 = vmax.f32 %v1564, %v1565
    %v1568 = vrcp.pop %v1567
    %v1569 = vmul.f32 %v1566, %v1568
    %v1570 = vmul.f32 %v1569, %v1569
    %v1571 = vmul.f32 0.002785687, %v1570
    %v1572 = vadd.f32 %v1571, -0.015866
    %v1573 = vmul.f32 %v1572, %v1570
    %v1574 = vadd.f32 %v1573, 0.04247222
    %v1575 = vmul.f32 %v1574, %v1570
    %v1576 = vadd.f32 %v1575, -0.074975304
    %v1577 = vmul.f32 %v1576, %v1570
    %v1578 = vadd.f32 %v1577, 0.1064488
    %v1579 = vmul.f32 %v1578, %v1570
    %v1580 = vadd.f32 %v1579, -0.14207031
    %v1581 = vmul.f32 %v1580, %v1570
    %v1582 = vadd.f32 %v1581, 0.19993454
    %v1583 = vmul.f32 %v1582, %v1570
    %v1584 = vadd.f32 %v1583, -0.33333147
    %v1585 = vmul.f32 %v1584, %v1570
    %v1586 = vmul.f32 %v1585, %v1569
    %v1587 = vadd.f32 %v1586, %v1569
    %vm1588 = vcmp.gt.f32.partialorder %v1565, %v1564
    %v1589 = vsub.f32 1.5707964, %v1587
    %v1590 = vsel %vm1588, %v1589, %v1587
    %vm1591 = vcmp.lt.f32.partialorder %v381, 0.0
    %v1592 = vsub.f32 3.1415927, %v1590
    %v1593 = vsel %vm1591, %v1592, %v1590
    %vm1594 = vcmp.lt.s32.totalorder %v381, 0
    %v1595 = vsel %vm1594, 3.1415927, 0.0
    %vm1596 = vcmp.eq.f32.partialorder %v536, 0.0
    %v1597 = vsel %vm1596, %v1595, %v1593
    %vm1598 = vcmp.ne.f32.partialorder %v381, %v381
    %vm1599 = vcmp.ne.f32.partialorder %v536, %v536
    %vm1600 = vmor %vm1598, %vm1599
    %v1601 = vsel %vm1600, nan, %v1597
    %vm1602 = vcmp.lt.f32.partialorder %v381, 0.0
    %v1603 = vsel %vm1602, 2.3561945, 0.7853982
    %vm1604 = vcmp.eq.s32.totalorder %v1564, inf
    %vm1605 = vcmp.eq.s32.totalorder %v1565, inf
    %vm1606 = vmand %vm1604, %vm1605
    %v1607 = vsel %vm1606, %v1603, %v1601
    %v1608 = vand.u32 2147483647, %v1607
    %v1609 = vand.u32 %v536, 2147483648
    %v1610 = vor.u32 %v1608, %v1609
    %v1611 = vand.u32 2147483647, %v386
    %v1612 = vand.u32 2147483647, %v541
    %v1613 = vmin.f32 %v1611, %v1612
    %v1614 = vmax.f32 %v1611, %v1612
    %v1615 = vrcp.pop %v1614
    %v1616 = vmul.f32 %v1613, %v1615
    %v1617 = vmul.f32 %v1616, %v1616
    %v1618 = vmul.f32 0.002785687, %v1617
    %v1619 = vadd.f32 %v1618, -0.015866
    %v1620 = vmul.f32 %v1619, %v1617
    %v1621 = vadd.f32 %v1620, 0.04247222
    %v1622 = vmul.f32 %v1621, %v1617
    %v1623 = vadd.f32 %v1622, -0.074975304
    %v1624 = vmul.f32 %v1623, %v1617
    %v1625 = vadd.f32 %v1624, 0.1064488
    %v1626 = vmul.f32 %v1625, %v1617
    %v1627 = vadd.f32 %v1626, -0.14207031
    %v1628 = vmul.f32 %v1627, %v1617
    %v1629 = vadd.f32 %v1628, 0.19993454
    %v1630 = vmul.f32 %v1629, %v1617
    %v1631 = vadd.f32 %v1630, -0.33333147
    %v1632 = vmul.f32 %v1631, %v1617
    %v1633 = vmul.f32 %v1632, %v1616
    %v1634 = vadd.f32 %v1633, %v1616
    %vm1635 = vcmp.gt.f32.partialorder %v1612, %v1611
    %v1636 = vsub.f32 1.5707964, %v1634
    %v1637 = vsel %vm1635, %v1636, %v1634
    %vm1638 = vcmp.lt.f32.partialorder %v386, 0.0
    %v1639 = vsub.f32 3.1415927, %v1637
    %v1640 = vsel %vm1638, %v1639, %v1637
    %vm1641 = vcmp.lt.s32.totalorder %v386, 0
    %v1642 = vsel %vm1641, 3.1415927, 0.0
    %vm1643 = vcmp.eq.f32.partialorder %v541, 0.0
    %v1644 = vsel %vm1643, %v1642, %v1640
    %vm1645 = vcmp.ne.f32.partialorder %v386, %v386
    %vm1646 = vcmp.ne.f32.partialorder %v541, %v541
    %vm1647 = vmor %vm1645, %vm1646
    %v1648 = vsel %vm1647, nan, %v1644
    %vm1649 = vcmp.lt.f32.partialorder %v386, 0.0
    %v1650 = vsel %vm1649, 2.3561945, 0.7853982
    %vm1651 = vcmp.eq.s32.totalorder %v1611, inf
    %vm1652 = vcmp.eq.s32.totalorder %v1612, inf
    %vm1653 = vmand %vm1651, %vm1652
    %v1654 = vsel %vm1653, %v1650, %v1648
    %v1655 = vand.u32 2147483647, %v1654
    %v1656 = vand.u32 %v541, 2147483648
    %v1657 = vor.u32 %v1655, %v1656
    %v1658 = vand.u32 2147483647, %v391
    %v1659 = vand.u32 2147483647, %v546
    %v1660 = vmin.f32 %v1658, %v1659
    %v1661 = vmax.f32 %v1658, %v1659
    %v1662 = vrcp.pop %v1661
    %v1663 = vmul.f32 %v1660, %v1662
    %v1664 = vmul.f32 %v1663, %v1663
    %v1665 = vmul.f32 0.002785687, %v1664
    %v1666 = vadd.f32 %v1665, -0.015866
    %v1667 = vmul.f32 %v1666, %v1664
    %v1668 = vadd.f32 %v1667, 0.04247222
    %v1669 = vmul.f32 %v1668, %v1664
    %v1670 = vadd.f32 %v1669, -0.074975304
    %v1671 = vmul.f32 %v1670, %v1664
    %v1672 = vadd.f32 %v1671, 0.1064488
    %v1673 = vmul.f32 %v1672, %v1664
    %v1674 = vadd.f32 %v1673, -0.14207031
    %v1675 = vmul.f32 %v1674, %v1664
    %v1676 = vadd.f32 %v1675, 0.19993454
    %v1677 = vmul.f32 %v1676, %v1664
    %v1678 = vadd.f32 %v1677, -0.33333147
    %v1679 = vmul.f32 %v1678, %v1664
    %v1680 = vmul.f32 %v1679, %v1663
    %v1681 = vadd.f32 %v1680, %v1663
    %vm1682 = vcmp.gt.f32.partialorder %v1659, %v1658
    %v1683 = vsub.f32 1.5707964, %v1681
    %v1684 = vsel %vm1682, %v1683, %v1681
    %vm1685 = vcmp.lt.f32.partialorder %v391, 0.0
    %v1686 = vsub.f32 3.1415927, %v1684
    %v1687 = vsel %vm1685, %v1686, %v1684
    %vm1688 = vcmp.lt.s32.totalorder %v391, 0
    %v1689 = vsel %vm1688, 3.1415927, 0.0
    %vm1690 = vcmp.eq.f32.partialorder %v546, 0.0
    %v1691 = vsel %vm1690, %v1689, %v1687
    %vm1692 = vcmp.ne.f32.partialorder %v391, %v391
    %vm1693 = vcmp.ne.f32.partialorder %v546, %v546
    %vm1694 = vmor %vm1692, %vm1693
    %v1695 = vsel %vm1694, nan, %v1691
    %vm1696 = vcmp.lt.f32.partialorder %v391, 0.0
    %v1697 = vsel %vm1696, 2.3561945, 0.7853982
    %vm1698 = vcmp.eq.s32.totalorder %v1658, inf
    %vm1699 = vcmp.eq.s32.totalorder %v1659, inf
    %vm1700 = vmand %vm1698, %vm1699
    %v1701 = vsel %vm1700, %v1697, %v1695
    %v1702 = vand.u32 2147483647, %v1701
    %v1703 = vand.u32 %v546, 2147483648
    %v1704 = vor.u32 %v1702, %v1703
    %v1705 = vand.u32 2147483647, %v616
    %v1706 = vand.u32 2147483647, %v771
    %v1707 = vmin.f32 %v1705, %v1706
    %v1708 = vmax.f32 %v1705, %v1706
    %v1709 = vrcp.pop %v1708
    %v1710 = vmul.f32 %v1707, %v1709
    %v1711 = vmul.f32 %v1710, %v1710
    %v1712 = vmul.f32 0.002785687, %v1711
    %v1713 = vadd.f32 %v1712, -0.015866
    %v1714 = vmul.f32 %v1713, %v1711
    %v1715 = vadd.f32 %v1714, 0.04247222
    %v1716 = vmul.f32 %v1715, %v1711
    %v1717 = vadd.f32 %v1716, -0.074975304
    %v1718 = vmul.f32 %v1717, %v1711
    %v1719 = vadd.f32 %v1718, 0.1064488
    %v1720 = vmul.f32 %v1719, %v1711
    %v1721 = vadd.f32 %v1720, -0.14207031
    %v1722 = vmul.f32 %v1721, %v1711
    %v1723 = vadd.f32 %v1722, 0.19993454
    %v1724 = vmul.f32 %v1723, %v1711
    %v1725 = vadd.f32 %v1724, -0.33333147
    %v1726 = vmul.f32 %v1725, %v1711
    %v1727 = vmul.f32 %v1726, %v1710
    %v1728 = vadd.f32 %v1727, %v1710
    %vm1729 = vcmp.gt.f32.partialorder %v1706, %v1705
    %v1730 = vsub.f32 1.5707964, %v1728
    %v1731 = vsel %vm1729, %v1730, %v1728
    %vm1732 = vcmp.lt.f32.partialorder %v616, 0.0
    %v1733 = vsub.f32 3.1415927, %v1731
    %v1734 = vsel %vm1732, %v1733, %v1731
    %vm1735 = vcmp.lt.s32.totalorder %v616, 0
    %v1736 = vsel %vm1735, 3.1415927, 0.0
    %vm1737 = vcmp.eq.f32.partialorder %v771, 0.0
    %v1738 = vsel %vm1737, %v1736, %v1734
    %vm1739 = vcmp.ne.f32.partialorder %v616, %v616
    %vm1740 = vcmp.ne.f32.partialorder %v771, %v771
    %vm1741 = vmor %vm1739, %vm1740
    %v1742 = vsel %vm1741, nan, %v1738
    %vm1743 = vcmp.lt.f32.partialorder %v616, 0.0
    %v1744 = vsel %vm1743, 2.3561945, 0.7853982
    %vm1745 = vcmp.eq.s32.totalorder %v1705, inf
    %vm1746 = vcmp.eq.s32.totalorder %v1706, inf
    %vm1747 = vmand %vm1745, %vm1746
    %v1748 = vsel %vm1747, %v1744, %v1742
    %v1749 = vand.u32 2147483647, %v1748
    %v1750 = vand.u32 %v771, 2147483648
    %v1751 = vor.u32 %v1749, %v1750
    %v1752 = vand.u32 2147483647, %v621
    %v1753 = vand.u32 2147483647, %v776
    %v1754 = vmin.f32 %v1752, %v1753
    %v1755 = vmax.f32 %v1752, %v1753
    %v1756 = vrcp.pop %v1755
    %v1757 = vmul.f32 %v1754, %v1756
    %v1758 = vmul.f32 %v1757, %v1757
    %v1759 = vmul.f32 0.002785687, %v1758
    %v1760 = vadd.f32 %v1759, -0.015866
    %v1761 = vmul.f32 %v1760, %v1758
    %v1762 = vadd.f32 %v1761, 0.04247222
    %v1763 = vmul.f32 %v1762, %v1758
    %v1764 = vadd.f32 %v1763, -0.074975304
    %v1765 = vmul.f32 %v1764, %v1758
    %v1766 = vadd.f32 %v1765, 0.1064488
    %v1767 = vmul.f32 %v1766, %v1758
    %v1768 = vadd.f32 %v1767, -0.14207031
    %v1769 = vmul.f32 %v1768, %v1758
    %v1770 = vadd.f32 %v1769, 0.19993454
    %v1771 = vmul.f32 %v1770, %v1758
    %v1772 = vadd.f32 %v1771, -0.33333147
    %v1773 = vmul.f32 %v1772, %v1758
    %v1774 = vmul.f32 %v1773, %v1757
    %v1775 = vadd.f32 %v1774, %v1757
    %vm1776 = vcmp.gt.f32.partialorder %v1753, %v1752
    %v1777 = vsub.f32 1.5707964, %v1775
    %v1778 = vsel %vm1776, %v1777, %v1775
    %vm1779 = vcmp.lt.f32.partialorder %v621, 0.0
    %v1780 = vsub.f32 3.1415927, %v1778
    %v1781 = vsel %vm1779, %v1780, %v1778
    %vm1782 = vcmp.lt.s32.totalorder %v621, 0
    %v1783 = vsel %vm1782, 3.1415927, 0.0
    %vm1784 = vcmp.eq.f32.partialorder %v776, 0.0
    %v1785 = vsel %vm1784, %v1783, %v1781
    %vm1786 = vcmp.ne.f32.partialorder %v621, %v621
    %vm1787 = vcmp.ne.f32.partialorder %v776, %v776
    %vm1788 = vmor %vm1786, %vm1787
    %v1789 = vsel %vm1788, nan, %v1785
    %vm1790 = vcmp.lt.f32.partialorder %v621, 0.0
    %v1791 = vsel %vm1790, 2.3561945, 0.7853982
    %vm1792 = vcmp.eq.s32.totalorder %v1752, inf
    %vm1793 = vcmp.eq.s32.totalorder %v1753, inf
    %vm1794 = vmand %vm1792, %vm1793
    %v1795 = vsel %vm1794, %v1791, %v1789
    %v1796 = vand.u32 2147483647, %v1795
    %v1797 = vand.u32 %v776, 2147483648
    %v1798 = vor.u32 %v1796, %v1797
    %v1799 = vand.u32 2147483647, %v626
    %v1800 = vand.u32 2147483647, %v781
    %v1801 = vmin.f32 %v1799, %v1800
    %v1802 = vmax.f32 %v1799, %v1800
    %v1803 = vrcp.pop %v1802
    %v1804 = vmul.f32 %v1801, %v1803
    %v1805 = vmul.f32 %v1804, %v1804
    %v1806 = vmul.f32 0.002785687, %v1805
    %v1807 = vadd.f32 %v1806, -0.015866
    %v1808 = vmul.f32 %v1807, %v1805
    %v1809 = vadd.f32 %v1808, 0.04247222
    %v1810 = vmul.f32 %v1809, %v1805
    %v1811 = vadd.f32 %v1810, -0.074975304
    %v1812 = vmul.f32 %v1811, %v1805
    %v1813 = vadd.f32 %v1812, 0.1064488
    %v1814 = vmul.f32 %v1813, %v1805
    %v1815 = vadd.f32 %v1814, -0.14207031
    %v1816 = vmul.f32 %v1815, %v1805
    %v1817 = vadd.f32 %v1816, 0.19993454
    %v1818 = vmul.f32 %v1817, %v1805
    %v1819 = vadd.f32 %v1818, -0.33333147
    %v1820 = vmul.f32 %v1819, %v1805
    %v1821 = vmul.f32 %v1820, %v1804
    %v1822 = vadd.f32 %v1821, %v1804
    %vm1823 = vcmp.gt.f32.partialorder %v1800, %v1799
    %v1824 = vsub.f32 1.5707964, %v1822
    %v1825 = vsel %vm1823, %v1824, %v1822
    %vm1826 = vcmp.lt.f32.partialorder %v626, 0.0
    %v1827 = vsub.f32 3.1415927, %v1825
    %v1828 = vsel %vm1826, %v1827, %v1825
    %vm1829 = vcmp.lt.s32.totalorder %v626, 0
    %v1830 = vsel %vm1829, 3.1415927, 0.0
    %vm1831 = vcmp.eq.f32.partialorder %v781, 0.0
    %v1832 = vsel %vm1831, %v1830, %v1828
    %vm1833 = vcmp.ne.f32.partialorder %v626, %v626
    %vm1834 = vcmp.ne.f32.partialorder %v781, %v781
    %vm1835 = vmor %vm1833, %vm1834
    %v1836 = vsel %vm1835, nan, %v1832
    %vm1837 = vcmp.lt.f32.partialorder %v626, 0.0
    %v1838 = vsel %vm1837, 2.3561945, 0.7853982
    %vm1839 = vcmp.eq.s32.totalorder %v1799, inf
    %vm1840 = vcmp.eq.s32.totalorder %v1800, inf
    %vm1841 = vmand %vm1839, %vm1840
    %v1842 = vsel %vm1841, %v1838, %v1836
    %v1843 = vand.u32 2147483647, %v1842
    %v1844 = vand.u32 %v781, 2147483648
    %v1845 = vor.u32 %v1843, %v1844
    %v1846 = vand.u32 2147483647, %v631
    %v1847 = vand.u32 2147483647, %v786
    %v1848 = vmin.f32 %v1846, %v1847
    %v1849 = vmax.f32 %v1846, %v1847
    %v1850 = vrcp.pop %v1849
    %v1851 = vmul.f32 %v1848, %v1850
    %v1852 = vmul.f32 %v1851, %v1851
    %v1853 = vmul.f32 0.002785687, %v1852
    %v1854 = vadd.f32 %v1853, -0.015866
    %v1855 = vmul.f32 %v1854, %v1852
    %v1856 = vadd.f32 %v1855, 0.04247222
    %v1857 = vmul.f32 %v1856, %v1852
    %v1858 = vadd.f32 %v1857, -0.074975304
    %v1859 = vmul.f32 %v1858, %v1852
    %v1860 = vadd.f32 %v1859, 0.1064488
    %v1861 = vmul.f32 %v1860, %v1852
    %v1862 = vadd.f32 %v1861, -0.14207031
    %v1863 = vmul.f32 %v1862, %v1852
    %v1864 = vadd.f32 %v1863, 0.19993454
    %v1865 = vmul.f32 %v1864, %v1852
    %v1866 = vadd.f32 %v1865, -0.33333147
    %v1867 = vmul.f32 %v1866, %v1852
    %v1868 = vmul.f32 %v1867, %v1851
    %v1869 = vadd.f32 %v1868, %v1851
    %vm1870 = vcmp.gt.f32.partialorder %v1847, %v1846
    %v1871 = vsub.f32 1.5707964, %v1869
    %v1872 = vsel %vm1870, %v1871, %v1869
    %vm1873 = vcmp.lt.f32.partialorder %v631, 0.0
    %v1874 = vsub.f32 3.1415927, %v1872
    %v1875 = vsel %vm1873, %v1874, %v1872
    %vm1876 = vcmp.lt.s32.totalorder %v631, 0
    %v1877 = vsel %vm1876, 3.1415927, 0.0
    %vm1878 = vcmp.eq.f32.partialorder %v786, 0.0
    %v1879 = vsel %vm1878, %v1877, %v1875
    %vm1880 = vcmp.ne.f32.partialorder %v631, %v631
    %vm1881 = vcmp.ne.f32.partialorder %v786, %v786
    %vm1882 = vmor %vm1880, %vm1881
    %v1883 = vsel %vm1882, nan, %v1879
    %vm1884 = vcmp.lt.f32.partialorder %v631, 0.0
    %v1885 = vsel %vm1884, 2.3561945, 0.7853982
    %vm1886 = vcmp.eq.s32.totalorder %v1846, inf
    %vm1887 = vcmp.eq.s32.totalorder %v1847, inf
    %vm1888 = vmand %vm1886, %vm1887
    %v1889 = vsel %vm1888, %v1885, %v1883
    %v1890 = vand.u32 2147483647, %v1889
    %v1891 = vand.u32 %v786, 2147483648
    %v1892 = vor.u32 %v1890, %v1891
    %v1893 = vand.u32 2147483647, %v636
    %v1894 = vand.u32 2147483647, %v791
    %v1895 = vmin.f32 %v1893, %v1894
    %v1896 = vmax.f32 %v1893, %v1894
    %v1897 = vrcp.pop %v1896
    %v1898 = vmul.f32 %v1895, %v1897
    %v1899 = vmul.f32 %v1898, %v1898
    %v1900 = vmul.f32 0.002785687, %v1899
    %v1901 = vadd.f32 %v1900, -0.015866
    %v1902 = vmul.f32 %v1901, %v1899
    %v1903 = vadd.f32 %v1902, 0.04247222
    %v1904 = vmul.f32 %v1903, %v1899
    %v1905 = vadd.f32 %v1904, -0.074975304
    %v1906 = vmul.f32 %v1905, %v1899
    %v1907 = vadd.f32 %v1906, 0.1064488
    %v1908 = vmul.f32 %v1907, %v1899
    %v1909 = vadd.f32 %v1908, -0.14207031
    %v1910 = vmul.f32 %v1909, %v1899
    %v1911 = vadd.f32 %v1910, 0.19993454
    %v1912 = vmul.f32 %v1911, %v1899
    %v1913 = vadd.f32 %v1912, -0.33333147
    %v1914 = vmul.f32 %v1913, %v1899
    %v1915 = vmul.f32 %v1914, %v1898
    %v1916 = vadd.f32 %v1915, %v1898
    %vm1917 = vcmp.gt.f32.partialorder %v1894, %v1893
    %v1918 = vsub.f32 1.5707964, %v1916
    %v1919 = vsel %vm1917, %v1918, %v1916
    %vm1920 = vcmp.lt.f32.partialorder %v636, 0.0
    %v1921 = vsub.f32 3.1415927, %v1919
    %v1922 = vsel %vm1920, %v1921, %v1919
    %vm1923 = vcmp.lt.s32.totalorder %v636, 0
    %v1924 = vsel %vm1923, 3.1415927, 0.0
    %vm1925 = vcmp.eq.f32.partialorder %v791, 0.0
    %v1926 = vsel %vm1925, %v1924, %v1922
    %vm1927 = vcmp.ne.f32.partialorder %v636, %v636
    %vm1928 = vcmp.ne.f32.partialorder %v791, %v791
    %vm1929 = vmor %vm1927, %vm1928
    %v1930 = vsel %vm1929, nan, %v1926
    %vm1931 = vcmp.lt.f32.partialorder %v636, 0.0
    %v1932 = vsel %vm1931, 2.3561945, 0.7853982
    %vm1933 = vcmp.eq.s32.totalorder %v1893, inf
    %vm1934 = vcmp.eq.s32.totalorder %v1894, inf
    %vm1935 = vmand %vm1933, %vm1934
    %v1936 = vsel %vm1935, %v1932, %v1930
    %v1937 = vand.u32 2147483647, %v1936
    %v1938 = vand.u32 %v791, 2147483648
    %v1939 = vor.u32 %v1937, %v1938
    %v1940 = vand.u32 2147483647, %v641
    %v1941 = vand.u32 2147483647, %v796
    %v1942 = vmin.f32 %v1940, %v1941
    %v1943 = vmax.f32 %v1940, %v1941
    %v1944 = vrcp.pop %v1943
    %v1945 = vmul.f32 %v1942, %v1944
    %v1946 = vmul.f32 %v1945, %v1945
    %v1947 = vmul.f32 0.002785687, %v1946
    %v1948 = vadd.f32 %v1947, -0.015866
    %v1949 = vmul.f32 %v1948, %v1946
    %v1950 = vadd.f32 %v1949, 0.04247222
    %v1951 = vmul.f32 %v1950, %v1946
    %v1952 = vadd.f32 %v1951, -0.074975304
    %v1953 = vmul.f32 %v1952, %v1946
    %v1954 = vadd.f32 %v1953, 0.1064488
    %v1955 = vmul.f32 %v1954, %v1946
    %v1956 = vadd.f32 %v1955, -0.14207031
    %v1957 = vmul.f32 %v1956, %v1946
    %v1958 = vadd.f32 %v1957, 0.19993454
    %v1959 = vmul.f32 %v1958, %v1946
    %v1960 = vadd.f32 %v1959, -0.33333147
    %v1961 = vmul.f32 %v1960, %v1946
    %v1962 = vmul.f32 %v1961, %v1945
    %v1963 = vadd.f32 %v1962, %v1945
    %vm1964 = vcmp.gt.f32.partialorder %v1941, %v1940
    %v1965 = vsub.f32 1.5707964, %v1963
    %v1966 = vsel %vm1964, %v1965, %v1963
    %vm1967 = vcmp.lt.f32.partialorder %v641, 0.0
    %v1968 = vsub.f32 3.1415927, %v1966
    %v1969 = vsel %vm1967, %v1968, %v1966
    %vm1970 = vcmp.lt.s32.totalorder %v641, 0
    %v1971 = vsel %vm1970, 3.1415927, 0.0
    %vm1972 = vcmp.eq.f32.partialorder %v796, 0.0
    %v1973 = vsel %vm1972, %v1971, %v1969
    %vm1974 = vcmp.ne.f32.partialorder %v641, %v641
    %vm1975 = vcmp.ne.f32.partialorder %v796, %v796
    %vm1976 = vmor %vm1974, %vm1975
    %v1977 = vsel %vm1976, nan, %v1973
    %vm1978 = vcmp.lt.f32.partialorder %v641, 0.0
    %v1979 = vsel %vm1978, 2.3561945, 0.7853982
    %vm1980 = vcmp.eq.s32.totalorder %v1940, inf
    %vm1981 = vcmp.eq.s32.totalorder %v1941, inf
    %vm1982 = vmand %vm1980, %vm1981
    %v1983 = vsel %vm1982, %v1979, %v1977
    %v1984 = vand.u32 2147483647, %v1983
    %v1985 = vand.u32 %v796, 2147483648
    %v1986 = vor.u32 %v1984, %v1985
    %v1987 = vand.u32 2147483647, %v646
    %v1988 = vand.u32 2147483647, %v801
    %v1989 = vmin.f32 %v1987, %v1988
    %v1990 = vmax.f32 %v1987, %v1988
    %v1991 = vrcp.pop %v1990
    %v1992 = vmul.f32 %v1989, %v1991
    %v1993 = vmul.f32 %v1992, %v1992
    %v1994 = vmul.f32 0.002785687, %v1993
    %v1995 = vadd.f32 %v1994, -0.015866
    %v1996 = vmul.f32 %v1995, %v1993
    %v1997 = vadd.f32 %v1996, 0.04247222
    %v1998 = vmul.f32 %v1997, %v1993
    %v1999 = vadd.f32 %v1998, -0.074975304
    %v2000 = vmul.f32 %v1999, %v1993
    %v2001 = vadd.f32 %v2000, 0.1064488
    %v2002 = vmul.f32 %v2001, %v1993
    %v2003 = vadd.f32 %v2002, -0.14207031
    %v2004 = vmul.f32 %v2003, %v1993
    %v2005 = vadd.f32 %v2004, 0.19993454
    %v2006 = vmul.f32 %v2005, %v1993
    %v2007 = vadd.f32 %v2006, -0.33333147
    %v2008 = vmul.f32 %v2007, %v1993
    %v2009 = vmul.f32 %v2008, %v1992
    %v2010 = vadd.f32 %v2009, %v1992
    %vm2011 = vcmp.gt.f32.partialorder %v1988, %v1987
    %v2012 = vsub.f32 1.5707964, %v2010
    %v2013 = vsel %vm2011, %v2012, %v2010
    %vm2014 = vcmp.lt.f32.partialorder %v646, 0.0
    %v2015 = vsub.f32 3.1415927, %v2013
    %v2016 = vsel %vm2014, %v2015, %v2013
    %vm2017 = vcmp.lt.s32.totalorder %v646, 0
    %v2018 = vsel %vm2017, 3.1415927, 0.0
    %vm2019 = vcmp.eq.f32.partialorder %v801, 0.0
    %v2020 = vsel %vm2019, %v2018, %v2016
    %vm2021 = vcmp.ne.f32.partialorder %v646, %v646
    %vm2022 = vcmp.ne.f32.partialorder %v801, %v801
    %vm2023 = vmor %vm2021, %vm2022
    %v2024 = vsel %vm2023, nan, %v2020
    %vm2025 = vcmp.lt.f32.partialorder %v646, 0.0
    %v2026 = vsel %vm2025, 2.3561945, 0.7853982
    %vm2027 = vcmp.eq.s32.totalorder %v1987, inf
    %vm2028 = vcmp.eq.s32.totalorder %v1988, inf
    %vm2029 = vmand %vm2027, %vm2028
    %v2030 = vsel %vm2029, %v2026, %v2024
    %v2031 = vand.u32 2147483647, %v2030
    %v2032 = vand.u32 %v801, 2147483648
    %v2033 = vor.u32 %v2031, %v2032
    %v2034 = vand.u32 2147483647, %v651
    %v2035 = vand.u32 2147483647, %v806
    %v2036 = vmin.f32 %v2034, %v2035
    %v2037 = vmax.f32 %v2034, %v2035
    %v2038 = vrcp.pop %v2037
    %v2039 = vmul.f32 %v2036, %v2038
    %v2040 = vmul.f32 %v2039, %v2039
    %v2041 = vmul.f32 0.002785687, %v2040
    %v2042 = vadd.f32 %v2041, -0.015866
    %v2043 = vmul.f32 %v2042, %v2040
    %v2044 = vadd.f32 %v2043, 0.04247222
    %v2045 = vmul.f32 %v2044, %v2040
    %v2046 = vadd.f32 %v2045, -0.074975304
    %v2047 = vmul.f32 %v2046, %v2040
    %v2048 = vadd.f32 %v2047, 0.1064488
    %v2049 = vmul.f32 %v2048, %v2040
    %v2050 = vadd.f32 %v2049, -0.14207031
    %v2051 = vmul.f32 %v2050, %v2040
    %v2052 = vadd.f32 %v2051, 0.19993454
    %v2053 = vmul.f32 %v2052, %v2040
    %v2054 = vadd.f32 %v2053, -0.33333147
    %v2055 = vmul.f32 %v2054, %v2040
    %v2056 = vmul.f32 %v2055, %v2039
    %v2057 = vadd.f32 %v2056, %v2039
    %vm2058 = vcmp.gt.f32.partialorder %v2035, %v2034
    %v2059 = vsub.f32 1.5707964, %v2057
    %v2060 = vsel %vm2058, %v2059, %v2057
    %vm2061 = vcmp.lt.f32.partialorder %v651, 0.0
    %v2062 = vsub.f32 3.1415927, %v2060
    %v2063 = vsel %vm2061, %v2062, %v2060
    %vm2064 = vcmp.lt.s32.totalorder %v651, 0
    %v2065 = vsel %vm2064, 3.1415927, 0.0
    %vm2066 = vcmp.eq.f32.partialorder %v806, 0.0
    %v2067 = vsel %vm2066, %v2065, %v2063
    %vm2068 = vcmp.ne.f32.partialorder %v651, %v651
    %vm2069 = vcmp.ne.f32.partialorder %v806, %v806
    %vm2070 = vmor %vm2068, %vm2069
    %v2071 = vsel %vm2070, nan, %v2067
    %vm2072 = vcmp.lt.f32.partialorder %v651, 0.0
    %v2073 = vsel %vm2072, 2.3561945, 0.7853982
    %vm2074 = vcmp.eq.s32.totalorder %v2034, inf
    %vm2075 = vcmp.eq.s32.totalorder %v2035, inf
    %vm2076 = vmand %vm2074, %vm2075
    %v2077 = vsel %vm2076, %v2073, %v2071
    %v2078 = vand.u32 2147483647, %v2077
    %v2079 = vand.u32 %v806, 2147483648
    %v2080 = vor.u32 %v2078, %v2079
    %v2081 = vand.u32 2147483647, %v656
    %v2082 = vand.u32 2147483647, %v811
    %v2083 = vmin.f32 %v2081, %v2082
    %v2084 = vmax.f32 %v2081, %v2082
    %v2085 = vrcp.pop %v2084
    %v2086 = vmul.f32 %v2083, %v2085
    %v2087 = vmul.f32 %v2086, %v2086
    %v2088 = vmul.f32 0.002785687, %v2087
    %v2089 = vadd.f32 %v2088, -0.015866
    %v2090 = vmul.f32 %v2089, %v2087
    %v2091 = vadd.f32 %v2090, 0.04247222
    %v2092 = vmul.f32 %v2091, %v2087
    %v2093 = vadd.f32 %v2092, -0.074975304
    %v2094 = vmul.f32 %v2093, %v2087
    %v2095 = vadd.f32 %v2094, 0.1064488
    %v2096 = vmul.f32 %v2095, %v2087
    %v2097 = vadd.f32 %v2096, -0.14207031
    %v2098 = vmul.f32 %v2097, %v2087
    %v2099 = vadd.f32 %v2098, 0.19993454
    %v2100 = vmul.f32 %v2099, %v2087
    %v2101 = vadd.f32 %v2100, -0.33333147
    %v2102 = vmul.f32 %v2101, %v2087
    %v2103 = vmul.f32 %v2102, %v2086
    %v2104 = vadd.f32 %v2103, %v2086
    %vm2105 = vcmp.gt.f32.partialorder %v2082, %v2081
    %v2106 = vsub.f32 1.5707964, %v2104
    %v2107 = vsel %vm2105, %v2106, %v2104
    %vm2108 = vcmp.lt.f32.partialorder %v656, 0.0
    %v2109 = vsub.f32 3.1415927, %v2107
    %v2110 = vsel %vm2108, %v2109, %v2107
    %vm2111 = vcmp.lt.s32.totalorder %v656, 0
    %v2112 = vsel %vm2111, 3.1415927, 0.0
    %vm2113 = vcmp.eq.f32.partialorder %v811, 0.0
    %v2114 = vsel %vm2113, %v2112, %v2110
    %vm2115 = vcmp.ne.f32.partialorder %v656, %v656
    %vm2116 = vcmp.ne.f32.partialorder %v811, %v811
    %vm2117 = vmor %vm2115, %vm2116
    %v2118 = vsel %vm2117, nan, %v2114
    %vm2119 = vcmp.lt.f32.partialorder %v656, 0.0
    %v2120 = vsel %vm2119, 2.3561945, 0.7853982
    %vm2121 = vcmp.eq.s32.totalorder %v2081, inf
    %vm2122 = vcmp.eq.s32.totalorder %v2082, inf
    %vm2123 = vmand %vm2121, %vm2122
    %v2124 = vsel %vm2123, %v2120, %v2118
    %v2125 = vand.u32 2147483647, %v2124
    %v2126 = vand.u32 %v811, 2147483648
    %v2127 = vor.u32 %v2125, %v2126
    %v2128 = vand.u32 2147483647, %v661
    %v2129 = vand.u32 2147483647, %v816
    %v2130 = vmin.f32 %v2128, %v2129
    %v2131 = vmax.f32 %v2128, %v2129
    %v2132 = vrcp.pop %v2131
    %v2133 = vmul.f32 %v2130, %v2132
    %v2134 = vmul.f32 %v2133, %v2133
    %v2135 = vmul.f32 0.002785687, %v2134
    %v2136 = vadd.f32 %v2135, -0.015866
    %v2137 = vmul.f32 %v2136, %v2134
    %v2138 = vadd.f32 %v2137, 0.04247222
    %v2139 = vmul.f32 %v2138, %v2134
    %v2140 = vadd.f32 %v2139, -0.074975304
    %v2141 = vmul.f32 %v2140, %v2134
    %v2142 = vadd.f32 %v2141, 0.1064488
    %v2143 = vmul.f32 %v2142, %v2134
    %v2144 = vadd.f32 %v2143, -0.14207031
    %v2145 = vmul.f32 %v2144, %v2134
    %v2146 = vadd.f32 %v2145, 0.19993454
    %v2147 = vmul.f32 %v2146, %v2134
    %v2148 = vadd.f32 %v2147, -0.33333147
    %v2149 = vmul.f32 %v2148, %v2134
    %v2150 = vmul.f32 %v2149, %v2133
    %v2151 = vadd.f32 %v2150, %v2133
    %vm2152 = vcmp.gt.f32.partialorder %v2129, %v2128
    %v2153 = vsub.f32 1.5707964, %v2151
    %v2154 = vsel %vm2152, %v2153, %v2151
    %vm2155 = vcmp.lt.f32.partialorder %v661, 0.0
    %v2156 = vsub.f32 3.1415927, %v2154
    %v2157 = vsel %vm2155, %v2156, %v2154
    %vm2158 = vcmp.lt.s32.totalorder %v661, 0
    %v2159 = vsel %vm2158, 3.1415927, 0.0
    %vm2160 = vcmp.eq.f32.partialorder %v816, 0.0
    %v2161 = vsel %vm2160, %v2159, %v2157
    %vm2162 = vcmp.ne.f32.partialorder %v661, %v661
    %vm2163 = vcmp.ne.f32.partialorder %v816, %v816
    %vm2164 = vmor %vm2162, %vm2163
    %v2165 = vsel %vm2164, nan, %v2161
    %vm2166 = vcmp.lt.f32.partialorder %v661, 0.0
    %v2167 = vsel %vm2166, 2.3561945, 0.7853982
    %vm2168 = vcmp.eq.s32.totalorder %v2128, inf
    %vm2169 = vcmp.eq.s32.totalorder %v2129, inf
    %vm2170 = vmand %vm2168, %vm2169
    %v2171 = vsel %vm2170, %v2167, %v2165
    %v2172 = vand.u32 2147483647, %v2171
    %v2173 = vand.u32 %v816, 2147483648
    %v2174 = vor.u32 %v2172, %v2173
    %v2175 = vand.u32 2147483647, %v666
    %v2176 = vand.u32 2147483647, %v821
    %v2177 = vmin.f32 %v2175, %v2176
    %v2178 = vmax.f32 %v2175, %v2176
    %v2179 = vrcp.pop %v2178
    %v2180 = vmul.f32 %v2177, %v2179
    %v2181 = vmul.f32 %v2180, %v2180
    %v2182 = vmul.f32 0.002785687, %v2181
    %v2183 = vadd.f32 %v2182, -0.015866
    %v2184 = vmul.f32 %v2183, %v2181
    %v2185 = vadd.f32 %v2184, 0.04247222
    %v2186 = vmul.f32 %v2185, %v2181
    %v2187 = vadd.f32 %v2186, -0.074975304
    %v2188 = vmul.f32 %v2187, %v2181
    %v2189 = vadd.f32 %v2188, 0.1064488
    %v2190 = vmul.f32 %v2189, %v2181
    %v2191 = vadd.f32 %v2190, -0.14207031
    %v2192 = vmul.f32 %v2191, %v2181
    %v2193 = vadd.f32 %v2192, 0.19993454
    %v2194 = vmul.f32 %v2193, %v2181
    %v2195 = vadd.f32 %v2194, -0.33333147
    %v2196 = vmul.f32 %v2195, %v2181
    %v2197 = vmul.f32 %v2196, %v2180
    %v2198 = vadd.f32 %v2197, %v2180
    %vm2199 = vcmp.gt.f32.partialorder %v2176, %v2175
    %v2200 = vsub.f32 1.5707964, %v2198
    %v2201 = vsel %vm2199, %v2200, %v2198
    %vm2202 = vcmp.lt.f32.partialorder %v666, 0.0
    %v2203 = vsub.f32 3.1415927, %v2201
    %v2204 = vsel %vm2202, %v2203, %v2201
    %vm2205 = vcmp.lt.s32.totalorder %v666, 0
    %v2206 = vsel %vm2205, 3.1415927, 0.0
    %vm2207 = vcmp.eq.f32.partialorder %v821, 0.0
    %v2208 = vsel %vm2207, %v2206, %v2204
    %vm2209 = vcmp.ne.f32.partialorder %v666, %v666
    %vm2210 = vcmp.ne.f32.partialorder %v821, %v821
    %vm2211 = vmor %vm2209, %vm2210
    %v2212 = vsel %vm2211, nan, %v2208
    %vm2213 = vcmp.lt.f32.partialorder %v666, 0.0
    %v2214 = vsel %vm2213, 2.3561945, 0.7853982
    %vm2215 = vcmp.eq.s32.totalorder %v2175, inf
    %vm2216 = vcmp.eq.s32.totalorder %v2176, inf
    %vm2217 = vmand %vm2215, %vm2216
    %v2218 = vsel %vm2217, %v2214, %v2212
    %v2219 = vand.u32 2147483647, %v2218
    %v2220 = vand.u32 %v821, 2147483648
    %v2221 = vor.u32 %v2219, %v2220
    %v2222 = vand.u32 2147483647, %v671
    %v2223 = vand.u32 2147483647, %v826
    %v2224 = vmin.f32 %v2222, %v2223
    %v2225 = vmax.f32 %v2222, %v2223
    %v2226 = vrcp.pop %v2225
    %v2227 = vmul.f32 %v2224, %v2226
    %v2228 = vmul.f32 %v2227, %v2227
    %v2229 = vmul.f32 0.002785687, %v2228
    %v2230 = vadd.f32 %v2229, -0.015866
    %v2231 = vmul.f32 %v2230, %v2228
    %v2232 = vadd.f32 %v2231, 0.04247222
    %v2233 = vmul.f32 %v2232, %v2228
    %v2234 = vadd.f32 %v2233, -0.074975304
    %v2235 = vmul.f32 %v2234, %v2228
    %v2236 = vadd.f32 %v2235, 0.1064488
    %v2237 = vmul.f32 %v2236, %v2228
    %v2238 = vadd.f32 %v2237, -0.14207031
    %v2239 = vmul.f32 %v2238, %v2228
    %v2240 = vadd.f32 %v2239, 0.19993454
    %v2241 = vmul.f32 %v2240, %v2228
    %v2242 = vadd.f32 %v2241, -0.33333147
    %v2243 = vmul.f32 %v2242, %v2228
    %v2244 = vmul.f32 %v2243, %v2227
    %v2245 = vadd.f32 %v2244, %v2227
    %vm2246 = vcmp.gt.f32.partialorder %v2223, %v2222
    %v2247 = vsub.f32 1.5707964, %v2245
    %v2248 = vsel %vm2246, %v2247, %v2245
    %vm2249 = vcmp.lt.f32.partialorder %v671, 0.0
    %v2250 = vsub.f32 3.1415927, %v2248
    %v2251 = vsel %vm2249, %v2250, %v2248
    %vm2252 = vcmp.lt.s32.totalorder %v671, 0
    %v2253 = vsel %vm2252, 3.1415927, 0.0
    %vm2254 = vcmp.eq.f32.partialorder %v826, 0.0
    %v2255 = vsel %vm2254, %v2253, %v2251
    %vm2256 = vcmp.ne.f32.partialorder %v671, %v671
    %vm2257 = vcmp.ne.f32.partialorder %v826, %v826
    %vm2258 = vmor %vm2256, %vm2257
    %v2259 = vsel %vm2258, nan, %v2255
    %vm2260 = vcmp.lt.f32.partialorder %v671, 0.0
    %v2261 = vsel %vm2260, 2.3561945, 0.7853982
    %vm2262 = vcmp.eq.s32.totalorder %v2222, inf
    %vm2263 = vcmp.eq.s32.totalorder %v2223, inf
    %vm2264 = vmand %vm2262, %vm2263
    %v2265 = vsel %vm2264, %v2261, %v2259
    %v2266 = vand.u32 2147483647, %v2265
    %v2267 = vand.u32 %v826, 2147483648
    %v2268 = vor.u32 %v2266, %v2267
    %v2269 = vand.u32 2147483647, %v676
    %v2270 = vand.u32 2147483647, %v831
    %v2271 = vmin.f32 %v2269, %v2270
    %v2272 = vmax.f32 %v2269, %v2270
    %v2273 = vrcp.pop %v2272
    %v2274 = vmul.f32 %v2271, %v2273
    %v2275 = vmul.f32 %v2274, %v2274
    %v2276 = vmul.f32 0.002785687, %v2275
    %v2277 = vadd.f32 %v2276, -0.015866
    %v2278 = vmul.f32 %v2277, %v2275
    %v2279 = vadd.f32 %v2278, 0.04247222
    %v2280 = vmul.f32 %v2279, %v2275
    %v2281 = vadd.f32 %v2280, -0.074975304
    %v2282 = vmul.f32 %v2281, %v2275
    %v2283 = vadd.f32 %v2282, 0.1064488
    %v2284 = vmul.f32 %v2283, %v2275
    %v2285 = vadd.f32 %v2284, -0.14207031
    %v2286 = vmul.f32 %v2285, %v2275
    %v2287 = vadd.f32 %v2286, 0.19993454
    %v2288 = vmul.f32 %v2287, %v2275
    %v2289 = vadd.f32 %v2288, -0.33333147
    %v2290 = vmul.f32 %v2289, %v2275
    %v2291 = vmul.f32 %v2290, %v2274
    %v2292 = vadd.f32 %v2291, %v2274
    %vm2293 = vcmp.gt.f32.partialorder %v2270, %v2269
    %v2294 = vsub.f32 1.5707964, %v2292
    %v2295 = vsel %vm2293, %v2294, %v2292
    %vm2296 = vcmp.lt.f32.partialorder %v676, 0.0
    %v2297 = vsub.f32 3.1415927, %v2295
    %v2298 = vsel %vm2296, %v2297, %v2295
    %vm2299 = vcmp.lt.s32.totalorder %v676, 0
    %v2300 = vsel %vm2299, 3.1415927, 0.0
    %vm2301 = vcmp.eq.f32.partialorder %v831, 0.0
    %v2302 = vsel %vm2301, %v2300, %v2298
    %vm2303 = vcmp.ne.f32.partialorder %v676, %v676
    %vm2304 = vcmp.ne.f32.partialorder %v831, %v831
    %vm2305 = vmor %vm2303, %vm2304
    %v2306 = vsel %vm2305, nan, %v2302
    %vm2307 = vcmp.lt.f32.partialorder %v676, 0.0
    %v2308 = vsel %vm2307, 2.3561945, 0.7853982
    %vm2309 = vcmp.eq.s32.totalorder %v2269, inf
    %vm2310 = vcmp.eq.s32.totalorder %v2270, inf
    %vm2311 = vmand %vm2309, %vm2310
    %v2312 = vsel %vm2311, %v2308, %v2306
    %v2313 = vand.u32 2147483647, %v2312
    %v2314 = vand.u32 %v831, 2147483648
    %v2315 = vor.u32 %v2313, %v2314
    %v2316 = vand.u32 2147483647, %v681
    %v2317 = vand.u32 2147483647, %v836
    %v2318 = vmin.f32 %v2316, %v2317
    %v2319 = vmax.f32 %v2316, %v2317
    %v2320 = vrcp.pop %v2319
    %v2321 = vmul.f32 %v2318, %v2320
    %v2322 = vmul.f32 %v2321, %v2321
    %v2323 = vmul.f32 0.002785687, %v2322
    %v2324 = vadd.f32 %v2323, -0.015866
    %v2325 = vmul.f32 %v2324, %v2322
    %v2326 = vadd.f32 %v2325, 0.04247222
    %v2327 = vmul.f32 %v2326, %v2322
    %v2328 = vadd.f32 %v2327, -0.074975304
    %v2329 = vmul.f32 %v2328, %v2322
    %v2330 = vadd.f32 %v2329, 0.1064488
    %v2331 = vmul.f32 %v2330, %v2322
    %v2332 = vadd.f32 %v2331, -0.14207031
    %v2333 = vmul.f32 %v2332, %v2322
    %v2334 = vadd.f32 %v2333, 0.19993454
    %v2335 = vmul.f32 %v2334, %v2322
    %v2336 = vadd.f32 %v2335, -0.33333147
    %v2337 = vmul.f32 %v2336, %v2322
    %v2338 = vmul.f32 %v2337, %v2321
    %v2339 = vadd.f32 %v2338, %v2321
    %vm2340 = vcmp.gt.f32.partialorder %v2317, %v2316
    %v2341 = vsub.f32 1.5707964, %v2339
    %v2342 = vsel %vm2340, %v2341, %v2339
    %vm2343 = vcmp.lt.f32.partialorder %v681, 0.0
    %v2344 = vsub.f32 3.1415927, %v2342
    %v2345 = vsel %vm2343, %v2344, %v2342
    %vm2346 = vcmp.lt.s32.totalorder %v681, 0
    %v2347 = vsel %vm2346, 3.1415927, 0.0
    %vm2348 = vcmp.eq.f32.partialorder %v836, 0.0
    %v2349 = vsel %vm2348, %v2347, %v2345
    %vm2350 = vcmp.ne.f32.partialorder %v681, %v681
    %vm2351 = vcmp.ne.f32.partialorder %v836, %v836
    %vm2352 = vmor %vm2350, %vm2351
    %v2353 = vsel %vm2352, nan, %v2349
    %vm2354 = vcmp.lt.f32.partialorder %v681, 0.0
    %v2355 = vsel %vm2354, 2.3561945, 0.7853982
    %vm2356 = vcmp.eq.s32.totalorder %v2316, inf
    %vm2357 = vcmp.eq.s32.totalorder %v2317, inf
    %vm2358 = vmand %vm2356, %vm2357
    %v2359 = vsel %vm2358, %v2355, %v2353
    %v2360 = vand.u32 2147483647, %v2359
    %v2361 = vand.u32 %v836, 2147483648
    %v2362 = vor.u32 %v2360, %v2361
    %v2363 = vand.u32 2147483647, %v686
    %v2364 = vand.u32 2147483647, %v841
    %v2365 = vmin.f32 %v2363, %v2364
    %v2366 = vmax.f32 %v2363, %v2364
    %v2367 = vrcp.pop %v2366
    %v2368 = vmul.f32 %v2365, %v2367
    %v2369 = vmul.f32 %v2368, %v2368
    %v2370 = vmul.f32 0.002785687, %v2369
    %v2371 = vadd.f32 %v2370, -0.015866
    %v2372 = vmul.f32 %v2371, %v2369
    %v2373 = vadd.f32 %v2372, 0.04247222
    %v2374 = vmul.f32 %v2373, %v2369
    %v2375 = vadd.f32 %v2374, -0.074975304
    %v2376 = vmul.f32 %v2375, %v2369
    %v2377 = vadd.f32 %v2376, 0.1064488
    %v2378 = vmul.f32 %v2377, %v2369
    %v2379 = vadd.f32 %v2378, -0.14207031
    %v2380 = vmul.f32 %v2379, %v2369
    %v2381 = vadd.f32 %v2380, 0.19993454
    %v2382 = vmul.f32 %v2381, %v2369
    %v2383 = vadd.f32 %v2382, -0.33333147
    %v2384 = vmul.f32 %v2383, %v2369
    %v2385 = vmul.f32 %v2384, %v2368
    %v2386 = vadd.f32 %v2385, %v2368
    %vm2387 = vcmp.gt.f32.partialorder %v2364, %v2363
    %v2388 = vsub.f32 1.5707964, %v2386
    %v2389 = vsel %vm2387, %v2388, %v2386
    %vm2390 = vcmp.lt.f32.partialorder %v686, 0.0
    %v2391 = vsub.f32 3.1415927, %v2389
    %v2392 = vsel %vm2390, %v2391, %v2389
    %vm2393 = vcmp.lt.s32.totalorder %v686, 0
    %v2394 = vsel %vm2393, 3.1415927, 0.0
    %vm2395 = vcmp.eq.f32.partialorder %v841, 0.0
    %v2396 = vsel %vm2395, %v2394, %v2392
    %vm2397 = vcmp.ne.f32.partialorder %v686, %v686
    %vm2398 = vcmp.ne.f32.partialorder %v841, %v841
    %vm2399 = vmor %vm2397, %vm2398
    %v2400 = vsel %vm2399, nan, %v2396
    %vm2401 = vcmp.lt.f32.partialorder %v686, 0.0
    %v2402 = vsel %vm2401, 2.3561945, 0.7853982
    %vm2403 = vcmp.eq.s32.totalorder %v2363, inf
    %vm2404 = vcmp.eq.s32.totalorder %v2364, inf
    %vm2405 = vmand %vm2403, %vm2404
    %v2406 = vsel %vm2405, %v2402, %v2400
    %v2407 = vand.u32 2147483647, %v2406
    %v2408 = vand.u32 %v841, 2147483648
    %v2409 = vor.u32 %v2407, %v2408
    %v2410 = vand.u32 2147483647, %v691
    %v2411 = vand.u32 2147483647, %v846
    %v2412 = vmin.f32 %v2410, %v2411
    %v2413 = vmax.f32 %v2410, %v2411
    %v2414 = vrcp.pop %v2413
    %v2415 = vmul.f32 %v2412, %v2414
    %v2416 = vmul.f32 %v2415, %v2415
    %v2417 = vmul.f32 0.002785687, %v2416
    %v2418 = vadd.f32 %v2417, -0.015866
    %v2419 = vmul.f32 %v2418, %v2416
    %v2420 = vadd.f32 %v2419, 0.04247222
    %v2421 = vmul.f32 %v2420, %v2416
    %v2422 = vadd.f32 %v2421, -0.074975304
    %v2423 = vmul.f32 %v2422, %v2416
    %v2424 = vadd.f32 %v2423, 0.1064488
    %v2425 = vmul.f32 %v2424, %v2416
    %v2426 = vadd.f32 %v2425, -0.14207031
    %v2427 = vmul.f32 %v2426, %v2416
    %v2428 = vadd.f32 %v2427, 0.19993454
    %v2429 = vmul.f32 %v2428, %v2416
    %v2430 = vadd.f32 %v2429, -0.33333147
    %v2431 = vmul.f32 %v2430, %v2416
    %v2432 = vmul.f32 %v2431, %v2415
    %v2433 = vadd.f32 %v2432, %v2415
    %vm2434 = vcmp.gt.f32.partialorder %v2411, %v2410
    %v2435 = vsub.f32 1.5707964, %v2433
    %v2436 = vsel %vm2434, %v2435, %v2433
    %vm2437 = vcmp.lt.f32.partialorder %v691, 0.0
    %v2438 = vsub.f32 3.1415927, %v2436
    %v2439 = vsel %vm2437, %v2438, %v2436
    %vm2440 = vcmp.lt.s32.totalorder %v691, 0
    %v2441 = vsel %vm2440, 3.1415927, 0.0
    %vm2442 = vcmp.eq.f32.partialorder %v846, 0.0
    %v2443 = vsel %vm2442, %v2441, %v2439
    %vm2444 = vcmp.ne.f32.partialorder %v691, %v691
    %vm2445 = vcmp.ne.f32.partialorder %v846, %v846
    %vm2446 = vmor %vm2444, %vm2445
    %v2447 = vsel %vm2446, nan, %v2443
    %vm2448 = vcmp.lt.f32.partialorder %v691, 0.0
    %v2449 = vsel %vm2448, 2.3561945, 0.7853982
    %vm2450 = vcmp.eq.s32.totalorder %v2410, inf
    %vm2451 = vcmp.eq.s32.totalorder %v2411, inf
    %vm2452 = vmand %vm2450, %vm2451
    %v2453 = vsel %vm2452, %v2449, %v2447
    %v2454 = vand.u32 2147483647, %v2453
    %v2455 = vand.u32 %v846, 2147483648
    %v2456 = vor.u32 %v2454, %v2455
    %v2457 = vand.u32 2147483647, %v696
    %v2458 = vand.u32 2147483647, %v851
    %v2459 = vmin.f32 %v2457, %v2458
    %v2460 = vmax.f32 %v2457, %v2458
    %v2461 = vrcp.pop %v2460
    %v2462 = vmul.f32 %v2459, %v2461
    %v2463 = vmul.f32 %v2462, %v2462
    %v2464 = vmul.f32 0.002785687, %v2463
    %v2465 = vadd.f32 %v2464, -0.015866
    %v2466 = vmul.f32 %v2465, %v2463
    %v2467 = vadd.f32 %v2466, 0.04247222
    %v2468 = vmul.f32 %v2467, %v2463
    %v2469 = vadd.f32 %v2468, -0.074975304
    %v2470 = vmul.f32 %v2469, %v2463
    %v2471 = vadd.f32 %v2470, 0.1064488
    %v2472 = vmul.f32 %v2471, %v2463
    %v2473 = vadd.f32 %v2472, -0.14207031
    %v2474 = vmul.f32 %v2473, %v2463
    %v2475 = vadd.f32 %v2474, 0.19993454
    %v2476 = vmul.f32 %v2475, %v2463
    %v2477 = vadd.f32 %v2476, -0.33333147
    %v2478 = vmul.f32 %v2477, %v2463
    %v2479 = vmul.f32 %v2478, %v2462
    %v2480 = vadd.f32 %v2479, %v2462
    %vm2481 = vcmp.gt.f32.partialorder %v2458, %v2457
    %v2482 = vsub.f32 1.5707964, %v2480
    %v2483 = vsel %vm2481, %v2482, %v2480
    %vm2484 = vcmp.lt.f32.partialorder %v696, 0.0
    %v2485 = vsub.f32 3.1415927, %v2483
    %v2486 = vsel %vm2484, %v2485, %v2483
    %vm2487 = vcmp.lt.s32.totalorder %v696, 0
    %v2488 = vsel %vm2487, 3.1415927, 0.0
    %vm2489 = vcmp.eq.f32.partialorder %v851, 0.0
    %v2490 = vsel %vm2489, %v2488, %v2486
    %vm2491 = vcmp.ne.f32.partialorder %v696, %v696
    %vm2492 = vcmp.ne.f32.partialorder %v851, %v851
    %vm2493 = vmor %vm2491, %vm2492
    %v2494 = vsel %vm2493, nan, %v2490
    %vm2495 = vcmp.lt.f32.partialorder %v696, 0.0
    %v2496 = vsel %vm2495, 2.3561945, 0.7853982
    %vm2497 = vcmp.eq.s32.totalorder %v2457, inf
    %vm2498 = vcmp.eq.s32.totalorder %v2458, inf
    %vm2499 = vmand %vm2497, %vm2498
    %v2500 = vsel %vm2499, %v2496, %v2494
    %v2501 = vand.u32 2147483647, %v2500
    %v2502 = vand.u32 %v851, 2147483648
    %v2503 = vor.u32 %v2501, %v2502
    %v2504 = vand.u32 2147483647, %v701
    %v2505 = vand.u32 2147483647, %v856
    %v2506 = vmin.f32 %v2504, %v2505
    %v2507 = vmax.f32 %v2504, %v2505
    %v2508 = vrcp.pop %v2507
    %v2509 = vmul.f32 %v2506, %v2508
    %v2510 = vmul.f32 %v2509, %v2509
    %v2511 = vmul.f32 0.002785687, %v2510
    %v2512 = vadd.f32 %v2511, -0.015866
    %v2513 = vmul.f32 %v2512, %v2510
    %v2514 = vadd.f32 %v2513, 0.04247222
    %v2515 = vmul.f32 %v2514, %v2510
    %v2516 = vadd.f32 %v2515, -0.074975304
    %v2517 = vmul.f32 %v2516, %v2510
    %v2518 = vadd.f32 %v2517, 0.1064488
    %v2519 = vmul.f32 %v2518, %v2510
    %v2520 = vadd.f32 %v2519, -0.14207031
    %v2521 = vmul.f32 %v2520, %v2510
    %v2522 = vadd.f32 %v2521, 0.19993454
    %v2523 = vmul.f32 %v2522, %v2510
    %v2524 = vadd.f32 %v2523, -0.33333147
    %v2525 = vmul.f32 %v2524, %v2510
    %v2526 = vmul.f32 %v2525, %v2509
    %v2527 = vadd.f32 %v2526, %v2509
    %vm2528 = vcmp.gt.f32.partialorder %v2505, %v2504
    %v2529 = vsub.f32 1.5707964, %v2527
    %v2530 = vsel %vm2528, %v2529, %v2527
    %vm2531 = vcmp.lt.f32.partialorder %v701, 0.0
    %v2532 = vsub.f32 3.1415927, %v2530
    %v2533 = vsel %vm2531, %v2532, %v2530
    %vm2534 = vcmp.lt.s32.totalorder %v701, 0
    %v2535 = vsel %vm2534, 3.1415927, 0.0
    %vm2536 = vcmp.eq.f32.partialorder %v856, 0.0
    %v2537 = vsel %vm2536, %v2535, %v2533
    %vm2538 = vcmp.ne.f32.partialorder %v701, %v701
    %vm2539 = vcmp.ne.f32.partialorder %v856, %v856
    %vm2540 = vmor %vm2538, %vm2539
    %v2541 = vsel %vm2540, nan, %v2537
    %vm2542 = vcmp.lt.f32.partialorder %v701, 0.0
    %v2543 = vsel %vm2542, 2.3561945, 0.7853982
    %vm2544 = vcmp.eq.s32.totalorder %v2504, inf
    %vm2545 = vcmp.eq.s32.totalorder %v2505, inf
    %vm2546 = vmand %vm2544, %vm2545
    %v2547 = vsel %vm2546, %v2543, %v2541
    %v2548 = vand.u32 2147483647, %v2547
    %v2549 = vand.u32 %v856, 2147483648
    %v2550 = vor.u32 %v2548, %v2549
    %v2551 = vld [vmem:[#allocation2] sm:$0xff]
    %v2552 = vld [vmem:[#allocation2 + $0x8] sm:$0xff]
    %v2553 = vld [vmem:[#allocation2 + $0x10] sm:$0xff]
    %v2554 = vld [vmem:[#allocation2 + $0x18] sm:$0xff]
    %v2555 = vld [vmem:[#allocation2 + $0x20] sm:$0xff]
    %v2556 = vld [vmem:[#allocation2 + $0x28] sm:$0xff]
    %v2557 = vld [vmem:[#allocation2 + $0x30] sm:$0xff]
    %v2558 = vld [vmem:[#allocation2 + $0x38] sm:$0xff]
    %v2559 = vld [vmem:[#allocation2 + $0x40] sm:$0xff]
    %v2560 = vld [vmem:[#allocation2 + $0x48] sm:$0xff]
    %v2561 = vld [vmem:[#allocation2 + $0x50] sm:$0xff]
    %v2562 = vld [vmem:[#allocation2 + $0x58] sm:$0xff]
    %v2563 = vld [vmem:[#allocation2 + $0x60] sm:$0xff]
    %v2564 = vld [vmem:[#allocation2 + $0x68] sm:$0xff]
    %v2565 = vld [vmem:[#allocation2 + $0x70] sm:$0xff]
    %v2566 = vld [vmem:[#allocation2 + $0x78] sm:$0xff]
    %v2567 = vld [vmem:[#allocation2 + $0x80] sm:$0xff]
    %v2568 = vld [vmem:[#allocation2 + $0x88] sm:$0xff]
    %v2569 = vsub.f32 %v905, %v1751
    %v2570 = vsub.f32 %v952, %v1798
    %v2571 = vsub.f32 %v999, %v1845
    %v2572 = vsub.f32 %v1046, %v1892
    %v2573 = vsub.f32 %v1093, %v1939
    %v2574 = vsub.f32 %v1140, %v1986
    %v2575 = vsub.f32 %v1187, %v2033
    %v2576 = vsub.f32 %v1234, %v2080
    %v2577 = vsub.f32 %v1281, %v2127
    %v2578 = vsub.f32 %v1328, %v2174
    %v2579 = vsub.f32 %v1375, %v2221
    %v2580 = vsub.f32 %v1422, %v2268
    %v2581 = vsub.f32 %v1469, %v2315
    %v2582 = vsub.f32 %v1516, %v2362
    %v2583 = vsub.f32 %v1563, %v2409
    %v2584 = vsub.f32 %v1610, %v2456
    %v2585 = vsub.f32 %v1657, %v2503
    %v2586 = vsub.f32 %v1704, %v2550
    %v2587 = vand.u32 2147483647, %v2569
    %v2588 = vand.u32 2147483647, %v2570
    %v2589 = vand.u32 2147483647, %v2571
    %v2590 = vand.u32 2147483647, %v2572
    %v2591 = vand.u32 2147483647, %v2573
    %v2592 = vand.u32 2147483647, %v2574
    %v2593 = vand.u32 2147483647, %v2575
    %v2594 = vand.u32 2147483647, %v2576
    %v2595 = vand.u32 2147483647, %v2577
    %v2596 = vand.u32 2147483647, %v2578
    %v2597 = vand.u32 2147483647, %v2579
    %v2598 = vand.u32 2147483647, %v2580
    %v2599 = vand.u32 2147483647, %v2581
    %v2600 = vand.u32 2147483647, %v2582
    %v2601 = vand.u32 2147483647, %v2583
    %v2602 = vand.u32 2147483647, %v2584
    %v2603 = vand.u32 2147483647, %v2585
    %v2604 = vand.u32 2147483647, %v2586
    %v2605 = vadd.f32 %v2551, %v2587
    %v2606 = vadd.f32 %v2552, %v2588
    %v2607 = vadd.f32 %v2553, %v2589
    %v2608 = vadd.f32 %v2554, %v2590
    %v2609 = vadd.f32 %v2555, %v2591
    %v2610 = vadd.f32 %v2556, %v2592
    %v2611 = vadd.f32 %v2557, %v2593
    %v2612 = vadd.f32 %v2558, %v2594
    %v2613 = vadd.f32 %v2559, %v2595
    %v2614 = vadd.f32 %v2560, %v2596
    %v2615 = vadd.f32 %v2561, %v2597
    %v2616 = vadd.f32 %v2562, %v2598
    %v2617 = vadd.f32 %v2563, %v2599
    %v2618 = vadd.f32 %v2564, %v2600
    %v2619 = vadd.f32 %v2565, %v2601
    %v2620 = vadd.f32 %v2566, %v2602
    %v2621 = vadd.f32 %v2567, %v2603
    %v2622 = vadd.f32 %v2568, %v2604
    %2623 = vst [vmem:[#allocation2] sm:$0xff] %v2605
    %2624 = vst [vmem:[#allocation2 + $0x8] sm:$0xff] %v2606
    %2625 = vst [vmem:[#allocation2 + $0x10] sm:$0xff] %v2607
    %2626 = vst [vmem:[#allocation2 + $0x18] sm:$0xff] %v2608
    %2627 = vst [vmem:[#allocation2 + $0x20] sm:$0xff] %v2609
    %2628 = vst [vmem:[#allocation2 + $0x28] sm:$0xff] %v2610
    %2629 = vst [vmem:[#allocation2 + $0x30] sm:$0xff] %v2611
    %2630 = vst [vmem:[#allocation2 + $0x38] sm:$0xff] %v2612
    %2631 = vst [vmem:[#allocation2 + $0x40] sm:$0xff] %v2613
    %2632 = vst [vmem:[#allocation2 + $0x48] sm:$0xff] %v2614
    %2633 = vst [vmem:[#allocation2 + $0x50] sm:$0xff] %v2615
    %2634 = vst [vmem:[#allocation2 + $0x58] sm:$0xff] %v2616
    %2635 = vst [vmem:[#allocation2 + $0x60] sm:$0xff] %v2617
    %2636 = vst [vmem:[#allocation2 + $0x68] sm:$0xff] %v2618
    %2637 = vst [vmem:[#allocation2 + $0x70] sm:$0xff] %v2619
    %2638 = vst [vmem:[#allocation2 + $0x78] sm:$0xff] %v2620
    %2639 = vst [vmem:[#allocation2 + $0x80] sm:$0xff] %v2621
    %2640 = vst [vmem:[#allocation2 + $0x88] sm:$0xff] %v2622
    // Predicated region
    $region38: #{tpu_custom_call.1} parent=1 // pred_check
      %p2641 = pneg %p81
    $region39: #{tpu_custom_call.1} parent=1 // pred_check_branch
      %2643 = sbr.rel (%p2641) target = $region41
    $region40: #{tpu_custom_call.1} parent=1 // pred_region
      %v2644 = vld [vmem:[#allocation2] sm:$0xff]
      %v2645 = vld [vmem:[#allocation2 + $0x8] sm:$0xff]
      %v2646 = vld [vmem:[#allocation2 + $0x10] sm:$0xff]
      %v2647 = vld [vmem:[#allocation2 + $0x18] sm:$0xff]
      %v2648 = vld [vmem:[#allocation2 + $0x20] sm:$0xff]
      %v2649 = vld [vmem:[#allocation2 + $0x28] sm:$0xff]
      %v2650 = vld [vmem:[#allocation2 + $0x30] sm:$0xff]
      %v2651 = vld [vmem:[#allocation2 + $0x38] sm:$0xff]
      %v2652 = vld [vmem:[#allocation2 + $0x40] sm:$0xff]
      %v2653 = vld [vmem:[#allocation2 + $0x48] sm:$0xff]
      %v2654 = vld [vmem:[#allocation2 + $0x50] sm:$0xff]
      %v2655 = vld [vmem:[#allocation2 + $0x58] sm:$0xff]
      %v2656 = vld [vmem:[#allocation2 + $0x60] sm:$0xff]
      %v2657 = vld [vmem:[#allocation2 + $0x68] sm:$0xff]
      %v2658 = vld [vmem:[#allocation2 + $0x70] sm:$0xff]
      %v2659 = vld [vmem:[#allocation2 + $0x78] sm:$0xff]
      %v2660 = vld [vmem:[#allocation2 + $0x80] sm:$0xff]
      %v2661 = vld [vmem:[#allocation2 + $0x88] sm:$0xff]
      %v2662 = vadd.f32 %v2644, %v2645
      %v2663 = vadd.f32 %v2662, %v2646
      %v2664 = vadd.f32 %v2663, %v2647
      %v2665 = vadd.f32 %v2664, %v2648
      %v2666 = vadd.f32 %v2665, %v2649
      %v2667 = vadd.f32 %v2666, %v2650
      %v2668 = vadd.f32 %v2667, %v2651
      %v2669 = vadd.f32 %v2668, %v2652
      %v2670 = vadd.f32 %v2669, %v2653
      %v2671 = vadd.f32 %v2670, %v2654
      %v2672 = vadd.f32 %v2671, %v2655
      %v2673 = vadd.f32 %v2672, %v2656
      %v2674 = vadd.f32 %v2673, %v2657
      %v2675 = vadd.f32 %v2674, %v2658
      %v2676 = vadd.f32 %v2675, %v2659
      %v2677 = vadd.f32 %v2676, %v2660
      %v2678 = vadd.f32 %v2677, %v2661
      %2679 = vadd.xlane.f32.xlu0 %v2678
      %v2680 = vpop.xlane.xlu0 %2679
      %v2681 = vrot.slane %v2680, 4
      %v2682 = vadd.f32 %v2680, %v2681
      %v2683 = vrot.slane %v2682, 2
      %v2684 = vadd.f32 %v2682, %v2683
      %v2685 = vrot.slane %v2684, 1
      %v2686 = vadd.f32 %v2684, %v2685
      %s2687 = vtos %v2686
      %v2688 = vstv %s2687
      %2689 = vst [vmem:[#allocation11] sm:$0xff] %v2688
    $region41: #{tpu_custom_call.1} parent=1 // pred_fallthru
      _
    // Predicated region
    $region42: #{tpu_custom_call.1} parent=1 // pred_check
      _
    $region43: #{tpu_custom_call.1} parent=1 // pred_check_branch
      %2691 = sbr.rel (0) target = $region45
    $region44: #{tpu_custom_call.1} parent=1 // pred_region
      %s2693 = ssub.s32 128, 128
      %2694 = vsyncadd [#allocation5], %s2693
      %s2696 = sshll.u32 [#allocation11], 4
      %s2697 = int_to_ptr.vmem [resolvable:$true] %s2696
      %2699 = dma.vmem_to_hbm [thread:$0]  %s2697, 128, %s4, [#allocation5]
    $region45: #{tpu_custom_call.1} parent=1 // pred_fallthru
      _
    // Predicated region
    $region46: #{tpu_custom_call.1} parent=1 // pred_check
      _
    $region47: #{tpu_custom_call.1} parent=1 // pred_check_branch
      %2701 = sbr.rel (0) target = $region49
    $region48: #{tpu_custom_call.1} parent=1 // pred_region
      %2702 = dma.done [#allocation5], 128
    $region49: #{tpu_custom_call.1} parent=1 // pred_fallthru
      _
    %2703 = vsyncpa [#allocation4], 1
    %2704 = vsyncpa [#allocation7], 1
    %2705 = vsyncpa [#allocation10], 1
    %2706 = vsyncpa [#allocation5], 1

</llo_original>
